<compile_context>
chip_gen: v5e
topology: v5e:2x2
jax: 0.10.0
libtpu: 0.0.40
codegen_flags: <defaults>
</compile_context>

<pallas_src>
import functools
import math

import jax
import jax.numpy as jnp
import numpy as np
from jax.experimental import pallas as pl
from jax.experimental.pallas import tpu as pltpu

EPS = 1e-5          # PyTorch nn.LayerNorm default
NEG_INF = -1e30     # large finite negative for the causal mask (exp() -> 0)


def _layernorm(x, w, b):
    mu = jnp.mean(x, axis=-1, keepdims=True)
    var = jnp.mean(jnp.square(x - mu), axis=-1, keepdims=True)
    return (x - mu) * jax.lax.rsqrt(var + EPS) * w + b


# ----------------------------------------------------------------------------
# Pallas kernels
# ----------------------------------------------------------------------------
def transformer_stack_kernel(x_ref,
                             ln1w_ref, ln1b_ref,
                             qw_ref, qb_ref, kw_ref, kb_ref, vw_ref, vb_ref,
                             outw_ref, outb_ref,
                             ln2w_ref, ln2b_ref,
                             fcw_ref, fcb_ref, pjw_ref, pjb_ref,
                             o_ref, acc_ref, *, num_heads):
    """All CLIP ResidualAttentionBlocks for one batch tile.

    grid = (batch_tiles, n_layers); the activation lives in `acc_ref` (VMEM,
    f32) across the layer axis, weights are the current layer's slice.
    """
    layer = pl.program_id(1)
    n_layers = pl.num_programs(1)

    @pl.when(layer == 0)
    def _():
        acc_ref[...] = x_ref[...].astype(jnp.float32)

    x = acc_ref[...]                                  # (Bt, S, D) f32
    Bt, S, D = x.shape
    H = num_heads
    hd = D // H
    scale = 1.0 / math.sqrt(hd)

    # --- x = x + MHA(ln_1(x), causal_mask) ---
    xn = _layernorm(x, ln1w_ref[0, 0], ln1b_ref[0, 0])
    xn2d = xn.reshape(Bt * S, D).astype(jnp.bfloat16)

    q = jnp.dot(xn2d, qw_ref[0], preferred_element_type=jnp.float32) + qb_ref[0, 0]
    k = jnp.dot(xn2d, kw_ref[0], preferred_element_type=jnp.float32) + kb_ref[0, 0]
    v = jnp.dot(xn2d, vw_ref[0], preferred_element_type=jnp.float32) + vb_ref[0, 0]
    q = (q * scale).reshape(Bt, S, D).astype(jnp.bfloat16)
    k = k.reshape(Bt, S, D).astype(jnp.bfloat16)
    v = v.reshape(Bt, S, D).astype(jnp.bfloat16)

    # causal mask generated in-kernel (no operand DMA)
    row = jax.lax.broadcasted_iota(jnp.int32, (S, S), 0)
    col = jax.lax.broadcasted_iota(jnp.int32, (S, S), 1)
    mask = jnp.where(col <= row, jnp.float32(0.0), jnp.float32(NEG_INF))

    outw = outw_ref[0]                                # (D, D) bf16; sliced below
    attn = jnp.zeros((Bt * S, D), jnp.float32)
    for h in range(H):                                # static unroll over heads,
        sl = slice(h * hd, (h + 1) * hd)              # batched over Bt per head
        s = jnp.einsum('bqd,bkd->bqk', q[:, :, sl], k[:, :, sl],
                       preferred_element_type=jnp.float32) + mask
        m = jnp.max(s, axis=-1, keepdims=True)
        p = jnp.exp(s - m)
        # exact division (matches jax.nn.softmax / torch softmax numerics)
        p = p / jnp.sum(p, axis=-1, keepdims=True)
        oh = jnp.einsum('bqk,bkd->bqd', p.astype(jnp.bfloat16), v[:, :, sl],
                        preferred_element_type=jnp.float32)       # (Bt, S, hd)
        # fold out_proj per head: avoids concatenating heads along lanes.
        attn = attn + jnp.dot(oh.reshape(Bt * S, hd).astype(jnp.bfloat16),
                              outw[sl, :],
                              preferred_element_type=jnp.float32)
    x = x + (attn + outb_ref[0, 0]).reshape(Bt, S, D)

    # --- x = x + MLP(ln_2(x)), MLP = Linear -> QuickGELU -> Linear ---
    xn2 = _layernorm(x, ln2w_ref[0, 0], ln2b_ref[0, 0])
    h1 = jnp.dot(xn2.reshape(Bt * S, D).astype(jnp.bfloat16), fcw_ref[0],
                 preferred_element_type=jnp.float32) + fcb_ref[0, 0]   # (Bt*S, 4D)
    h1 = h1 * jax.nn.sigmoid(1.702 * h1)              # QuickGELU (f32)
    mlp = jnp.dot(h1.astype(jnp.bfloat16), pjw_ref[0],
                  preferred_element_type=jnp.float32) + pjb_ref[0, 0]
    x = x + mlp.reshape(Bt, S, D)

    acc_ref[...] = x

    @pl.when(layer == n_layers - 1)
    def _():
        o_ref[...] = x.astype(o_ref.dtype)


def final_proj_kernel(x_ref, lnw_ref, lnb_ref, proj_ref, o_ref):
    """ln_final (per-token) + @ text_projection on the gathered EOT rows."""
    x = _layernorm(x_ref[...], lnw_ref[0], lnb_ref[0])            # (B, D) f32
    o_ref[...] = jnp.dot(x.astype(jnp.bfloat16), proj_ref[...],
                         preferred_element_type=jnp.float32)      # (B, P)


# ----------------------------------------------------------------------------
# pallas_call wrappers
# ----------------------------------------------------------------------------
_PARAM_ORDER = ("ln1w", "ln1b", "qw", "qb", "kw", "kb", "vw", "vb",
                "outw", "outb", "ln2w", "ln2b", "fcw", "fcb", "pjw", "pjb")


def _const_spec(shape):
    nd = len(shape)
    return pl.BlockSpec(shape, lambda *_: (0,) * nd)


def _pick_batch_tile(B, max_bt=8):
    for bt in range(min(B, max_bt), 0, -1):
        if B % bt == 0:
            return bt
    return 1


def run_transformer(x, kp, num_heads, bt):
    B, S, D = x.shape
    L = kp["qw"].shape[0]
    assert B % bt == 0
    n_bt = B // bt

    in_specs = [pl.BlockSpec((bt, S, D), lambda b, l: (b, 0, 0))]
    args = [x]
    for name in _PARAM_ORDER:
        p = kp[name]
        args.append(p)
        # layer-stacked weights: stream one layer's slice per grid step.
        in_specs.append(pl.BlockSpec((1,) + p.shape[1:], lambda b, l: (l, 0, 0)))

    kern = functools.partial(transformer_stack_kernel, num_heads=num_heads)
    return pl.pallas_call(
        kern,
        grid=(n_bt, L),
        in_specs=in_specs,
        out_specs=pl.BlockSpec((bt, S, D), lambda b, l: (b, 0, 0)),
        out_shape=jax.ShapeDtypeStruct((B, S, D), jnp.float32),
        scratch_shapes=[pltpu.VMEM((bt, S, D), jnp.float32)],
        compiler_params=pltpu.CompilerParams(
            dimension_semantics=("parallel", "arbitrary")),
    )(*args)


def run_final_projection(x_eot, lnw, lnb, tproj):
    B, D = x_eot.shape
    P = tproj.shape[1]
    return pl.pallas_call(
        final_proj_kernel,
        grid=(1,),
        in_specs=[_const_spec((B, D)), _const_spec((1, D)),
                  _const_spec((1, D)), _const_spec((D, P))],
        out_specs=_const_spec((B, P)),
        out_shape=jax.ShapeDtypeStruct((B, P), jnp.float32),
    )(x_eot, lnw, lnb, tproj)


# ----------------------------------------------------------------------------
# Full TextEncoder_Fix forward
# ----------------------------------------------------------------------------
def text_encoder_forward(text, params, kparams, bt=None):
    # token embedding lookup + positional embedding (glue gather / add)
    x = params["token_embedding"][text] + params["positional_embedding"][None]
    x = x.astype(jnp.float32)
    B = x.shape[0]
    if bt is None:
        bt = _pick_batch_tile(B)

    x = run_transformer(x, kparams, params["num_heads"], bt)

    # EOT-token gather: LayerNorm is per-token so gather-then-ln == ln-then-gather.
    eot = jnp.argmax(text, axis=-1)
    x_eot = jnp.take_along_axis(x, eot[:, None, None], axis=1)[:, 0]   # (B, D)

    return run_final_projection(x_eot,
                                params["ln_final_w"][None],
                                params["ln_final_b"][None],
                                kparams["text_projection"])


# ----------------------------------------------------------------------------
# Deterministic synthetic parameters + pure-JAX references
# ----------------------------------------------------------------------------
def make_params(key, vocab, S, D, H, n_layers, P):
    keys = iter(jax.random.split(key, 16 + 16 * n_layers))

    def rnd(shape, scale=0.02):
        return (scale * jax.random.normal(next(keys), shape)).astype(jnp.float32)

    layers = []
    for _ in range(n_layers):
        layers.append(dict(
            ln1w=1.0 + rnd((D,), 0.1), ln1b=rnd((D,), 0.1),
            qkvw=rnd((D, 3 * D)), qkvb=rnd((3 * D,)),
            outw=rnd((D, D)), outb=rnd((D,)),
            ln2w=1.0 + rnd((D,), 0.1), ln2b=rnd((D,), 0.1),
            fcw=rnd((D, 4 * D)), fcb=rnd((4 * D,)),
            pjw=rnd((4 * D, D)), pjb=rnd((D,)),
        ))

    return dict(
        token_embedding=rnd((vocab, D)),
        positional_embedding=rnd((S, D)),
        layers=layers,
        ln_final_w=1.0 + rnd((D,), 0.1),
        ln_final_b=rnd((D,), 0.1),
        text_projection=rnd((D, P)),
        num_heads=H,
    )


def build_kernel_params(params):
    """Stack per-layer weights along a leading layer axis; weights -> bf16."""
    bf16 = jnp.bfloat16
    layers = params["layers"]
    D = layers[0]["qkvw"].shape[0]

    def stk(fn, dtype=None, add_row=False):
        a = jnp.stack([fn(l) for l in layers])
        if add_row:
            a = a[:, None, :]
        if dtype is not None:
            a = a.astype(dtype)
        return a

    return dict(
        ln1w=stk(lambda l: l["ln1w"], add_row=True),
        ln1b=stk(lambda l: l["ln1b"], add_row=True),
        qw=stk(lambda l: l["qkvw"][:, :D], bf16),
        qb=stk(lambda l: l["qkvb"][:D], add_row=True),
        kw=stk(lambda l: l["qkvw"][:, D:2 * D], bf16),
        kb=stk(lambda l: l["qkvb"][D:2 * D], add_row=True),
        vw=stk(lambda l: l["qkvw"][:, 2 * D:], bf16),
        vb=stk(lambda l: l["qkvb"][2 * D:], add_row=True),
        outw=stk(lambda l: l["outw"], bf16),
        outb=stk(lambda l: l["outb"], add_row=True),
        ln2w=stk(lambda l: l["ln2w"], add_row=True),
        ln2b=stk(lambda l: l["ln2b"], add_row=True),
        fcw=stk(lambda l: l["fcw"], bf16),
        fcb=stk(lambda l: l["fcb"], add_row=True),
        pjw=stk(lambda l: l["pjw"], bf16),
        pjb=stk(lambda l: l["pjb"], add_row=True),
        text_projection=params["text_projection"].astype(bf16),
    )


def ref_forward(text, p, compute_dtype=jnp.float32):
    """Pure-JAX reference.  compute_dtype=bfloat16 mimics the kernel's mixed
    precision (bf16 dot inputs / weights, f32 accumulation & pointwise)."""
    cd = compute_dtype
    x = (p["token_embedding"][text] + p["positional_embedding"][None]).astype(jnp.float32)
    B, S, D = x.shape
    H = p["num_heads"]
    hd = D // H
    scale = 1.0 / math.sqrt(hd)
    causal = jnp.triu(jnp.ones((S, S), dtype=bool), k=1)
    mask = jnp.where(causal, -jnp.inf, 0.0).astype(jnp.float32)

    for lyr in p["layers"]:
        xn = _layernorm(x, lyr["ln1w"], lyr["ln1b"])
        qkv = jnp.dot(xn.astype(cd), lyr["qkvw"].astype(cd),
                      preferred_element_type=jnp.float32) + lyr["qkvb"]
        q, k, v = jnp.split(qkv, 3, axis=-1)
        q = q * scale
        qh = q.reshape(B, S, H, hd).transpose(0, 2, 1, 3)
        kh = k.reshape(B, S, H, hd).transpose(0, 2, 1, 3)
        vh = v.reshape(B, S, H, hd).transpose(0, 2, 1, 3)
        s = jnp.einsum('bhqd,bhkd->bhqk', qh.astype(cd), kh.astype(cd),
                       preferred_element_type=jnp.float32) + mask
        a = jax.nn.softmax(s, axis=-1)
        o = jnp.einsum('bhqk,bhkd->bhqd', a.astype(cd), vh.astype(cd),
                       preferred_element_type=jnp.float32)
        o = o.transpose(0, 2, 1, 3).reshape(B, S, D)
        x = x + jnp.dot(o.astype(cd), lyr["outw"].astype(cd),
                        preferred_element_type=jnp.float32) + lyr["outb"]
        xn2 = _layernorm(x, lyr["ln2w"], lyr["ln2b"])
        h1 = jnp.dot(xn2.astype(cd), lyr["fcw"].astype(cd),
                     preferred_element_type=jnp.float32) + lyr["fcb"]
        h1 = h1 * jax.nn.sigmoid(1.702 * h1)
        x = x + jnp.dot(h1.astype(cd), lyr["pjw"].astype(cd),
                        preferred_element_type=jnp.float32) + lyr["pjb"]

    x = _layernorm(x, p["ln_final_w"], p["ln_final_b"])
    eot = jnp.argmax(text, axis=-1)
    xe = x[jnp.arange(B), eot]
    return jnp.dot(xe.astype(cd), p["text_projection"].astype(cd),
                   preferred_element_type=jnp.float32)


if __name__ == "__main__":
    B, S, D, H, L, P, V = 2, 8, 32, 4, 2, 64, 100
    key = jax.random.PRNGKey(0)
    k_text, k_params = jax.random.split(key)

    text = jax.random.randint(k_text, (B, S), 1, V, dtype=jnp.int32)
    params = make_params(k_params, V, S, D, H, L, P)
    kparams = build_kernel_params(params)

    out = text_encoder_forward(text, params, kparams)
    out = jax.block_until_ready(out)

    # check against a reference that mimics the kernel's bf16 mixed precision
    # (small atol headroom covers f32 summation-order differences between the
    # per-head folded out-projection and the reference's single matmul).
    ref_bf16 = ref_forward(text, params, compute_dtype=jnp.bfloat16)
    np.testing.assert_allclose(np.asarray(out), np.asarray(ref_bf16),
                               rtol=1e-2, atol=5e-4)
    # sanity check against the pure-f32 reference (bf16 weight/input rounding slack)
    ref_f32 = ref_forward(text, params, compute_dtype=jnp.float32)
    np.testing.assert_allclose(np.asarray(out), np.asarray(ref_f32),
                               rtol=5e-2, atol=1e-2)
    print("KERNEL_OK")
</pallas_src>

<mosaic_0001>
module attributes {stable_mosaic.version = 11 : i64} {
  func.func @transformer_stack_kernel(%arg0: i32, %arg1: i32, %arg2: memref<2x8x32xf32, #tpu.memory_space<vmem>>, %arg3: memref<1x1x32xf32, #tpu.memory_space<vmem>>, %arg4: memref<1x1x32xf32, #tpu.memory_space<vmem>>, %arg5: memref<1x32x32xbf16, #tpu.memory_space<vmem>>, %arg6: memref<1x1x32xf32, #tpu.memory_space<vmem>>, %arg7: memref<1x32x32xbf16, #tpu.memory_space<vmem>>, %arg8: memref<1x1x32xf32, #tpu.memory_space<vmem>>, %arg9: memref<1x32x32xbf16, #tpu.memory_space<vmem>>, %arg10: memref<1x1x32xf32, #tpu.memory_space<vmem>>, %arg11: memref<1x32x32xbf16, #tpu.memory_space<vmem>>, %arg12: memref<1x1x32xf32, #tpu.memory_space<vmem>>, %arg13: memref<1x1x32xf32, #tpu.memory_space<vmem>>, %arg14: memref<1x1x32xf32, #tpu.memory_space<vmem>>, %arg15: memref<1x32x128xbf16, #tpu.memory_space<vmem>>, %arg16: memref<1x1x128xf32, #tpu.memory_space<vmem>>, %arg17: memref<1x128x32xbf16, #tpu.memory_space<vmem>>, %arg18: memref<1x1x32xf32, #tpu.memory_space<vmem>>, %arg19: memref<2x8x32xf32, #tpu.memory_space<vmem>>, %arg20: memref<2x8x32xf32, #tpu.memory_space<vmem>>) attributes {dimension_semantics = [#tpu.dimension_semantics<parallel>, #tpu.dimension_semantics<arbitrary>], iteration_bounds = array<i64: 1, 2>, scalar_prefetch = 0 : i64, scratch_operands = 1 : i64, tpu.core_type = #tpu.core_type<tc>, window_params = [{transform_indices = @transform_0, window_bounds = array<i64: 2, 8, 32>}, {transform_indices = @transform_1, window_bounds = array<i64: 1, 1, 32>}, {transform_indices = @transform_2, window_bounds = array<i64: 1, 1, 32>}, {transform_indices = @transform_3, window_bounds = array<i64: 1, 32, 32>}, {transform_indices = @transform_4, window_bounds = array<i64: 1, 1, 32>}, {transform_indices = @transform_5, window_bounds = array<i64: 1, 32, 32>}, {transform_indices = @transform_6, window_bounds = array<i64: 1, 1, 32>}, {transform_indices = @transform_7, window_bounds = array<i64: 1, 32, 32>}, {transform_indices = @transform_8, window_bounds = array<i64: 1, 1, 32>}, {transform_indices = @transform_9, window_bounds = array<i64: 1, 32, 32>}, {transform_indices = @transform_10, window_bounds = array<i64: 1, 1, 32>}, {transform_indices = @transform_11, window_bounds = array<i64: 1, 1, 32>}, {transform_indices = @transform_12, window_bounds = array<i64: 1, 1, 32>}, {transform_indices = @transform_13, window_bounds = array<i64: 1, 32, 128>}, {transform_indices = @transform_14, window_bounds = array<i64: 1, 1, 128>}, {transform_indices = @transform_15, window_bounds = array<i64: 1, 128, 32>}, {transform_indices = @transform_16, window_bounds = array<i64: 1, 1, 32>}, {transform_indices = @transform_17, window_bounds = array<i64: 2, 8, 32>}]} {
    %c0_i32 = arith.constant 0 : i32
    %0 = arith.cmpi eq, %arg1, %c0_i32 : i32
    %1 = arith.extui %0 : i1 to i32
    %c0_i32_0 = arith.constant 0 : i32
    %2 = arith.cmpi ne, %1, %c0_i32_0 : i32
    scf.if %2 {
      %c0_95 = arith.constant 0 : index
      %c0_96 = arith.constant 0 : index
      %c0_97 = arith.constant 0 : index
      %235 = vector.load %arg2[%c0_95, %c0_96, %c0_97] : memref<2x8x32xf32, #tpu.memory_space<vmem>>, vector<2x8x32xf32>
      %c0_98 = arith.constant 0 : index
      %c0_99 = arith.constant 0 : index
      %c0_100 = arith.constant 0 : index
      %236 = vector.load %arg20[%c0_98, %c0_99, %c0_100] : memref<2x8x32xf32, #tpu.memory_space<vmem>>, vector<2x8x32xf32>
      tpu.vector_store %arg20[%c0_98, %c0_99, %c0_100], %235 {strides = array<i32>} : memref<2x8x32xf32, #tpu.memory_space<vmem>>, vector<2x8x32xf32>,
    } else {
    }
    %c0 = arith.constant 0 : index
    %c0_1 = arith.constant 0 : index
    %c0_2 = arith.constant 0 : index
    %3 = vector.load %arg20[%c0, %c0_1, %c0_2] : memref<2x8x32xf32, #tpu.memory_space<vmem>>, vector<2x8x32xf32>
    %c0_3 = arith.constant 0 : index
    %c0_4 = arith.constant 0 : index
    %c0_5 = arith.constant 0 : index
    %4 = vector.load %arg3[%c0_3, %c0_4, %c0_5] : memref<1x1x32xf32, #tpu.memory_space<vmem>>, vector<1x1x32xf32>
    %5 = vector.shape_cast %4 : vector<1x1x32xf32> to vector<32xf32>
    %c0_6 = arith.constant 0 : index
    %c0_7 = arith.constant 0 : index
    %c0_8 = arith.constant 0 : index
    %6 = vector.load %arg4[%c0_6, %c0_7, %c0_8] : memref<1x1x32xf32, #tpu.memory_space<vmem>>, vector<1x1x32xf32>
    %7 = vector.shape_cast %6 : vector<1x1x32xf32> to vector<32xf32>
    %cst = arith.constant dense<0.000000e+00> : vector<2x8xf32>
    %8 = vector.multi_reduction <add>, %3, %cst [2] : vector<2x8x32xf32> to vector<2x8xf32>
    %9 = vector.shape_cast %8 : vector<2x8xf32> to vector<2x8x1xf32>
    %cst_9 = arith.constant 3.200000e+01 : f32
    %10 = vector.broadcast %cst_9 : f32 to vector<2x8x1xf32>
    %11 = arith.divf %9, %10 : vector<2x8x1xf32>
    %12 = vector.broadcast %11 : vector<2x8x1xf32> to vector<2x8x32xf32>
    %13 = arith.subf %3, %12 : vector<2x8x32xf32>
    %14 = arith.mulf %13, %13 : vector<2x8x32xf32>
    %cst_10 = arith.constant dense<0.000000e+00> : vector<2x8xf32>
    %15 = vector.multi_reduction <add>, %14, %cst_10 [2] : vector<2x8x32xf32> to vector<2x8xf32>
    %16 = vector.shape_cast %15 : vector<2x8xf32> to vector<2x8x1xf32>
    %cst_11 = arith.constant 3.200000e+01 : f32
    %17 = vector.broadcast %cst_11 : f32 to vector<2x8x1xf32>
    %18 = arith.divf %16, %17 : vector<2x8x1xf32>
    %19 = vector.broadcast %11 : vector<2x8x1xf32> to vector<2x8x32xf32>
    %20 = arith.subf %3, %19 : vector<2x8x32xf32>
    %cst_12 = arith.constant 9.99999974E-6 : f32
    %21 = vector.broadcast %cst_12 : f32 to vector<2x8x1xf32>
    %22 = arith.addf %18, %21 : vector<2x8x1xf32>
    %23 = math.rsqrt %22 : vector<2x8x1xf32>
    %24 = vector.broadcast %23 : vector<2x8x1xf32> to vector<2x8x32xf32>
    %25 = arith.mulf %20, %24 : vector<2x8x32xf32>
    %26 = vector.shape_cast %5 : vector<32xf32> to vector<1x1x32xf32>
    %27 = vector.broadcast %26 : vector<1x1x32xf32> to vector<2x8x32xf32>
    %28 = arith.mulf %25, %27 : vector<2x8x32xf32>
    %29 = vector.shape_cast %7 : vector<32xf32> to vector<1x1x32xf32>
    %30 = vector.broadcast %29 : vector<1x1x32xf32> to vector<2x8x32xf32>
    %31 = arith.addf %28, %30 : vector<2x8x32xf32>
    %32 = vector.shape_cast %31 : vector<2x8x32xf32> to vector<16x32xf32>
    %33 = arith.truncf %32 : vector<16x32xf32> to vector<16x32xbf16>
    %c0_13 = arith.constant 0 : index
    %c0_14 = arith.constant 0 : index
    %c0_15 = arith.constant 0 : index
    %34 = vector.load %arg5[%c0_13, %c0_14, %c0_15] : memref<1x32x32xbf16, #tpu.memory_space<vmem>>, vector<1x32x32xbf16>
    %35 = vector.shape_cast %34 : vector<1x32x32xbf16> to vector<32x32xbf16>
    %cst_16 = arith.constant dense<0.000000e+00> : vector<16x32xf32>
    %36 = tpu.matmul %33, %35, %cst_16 {dimension_numbers = #tpu.dot_dimension_numbers<[1], [0], [0], [1], [0, 0, 1, 1], [], []>} : vector<16x32xbf16>, vector<32x32xbf16>, vector<16x32xf32> -> vector<16x32xf32>
    %c0_17 = arith.constant 0 : index
    %c0_18 = arith.constant 0 : index
    %c0_19 = arith.constant 0 : index
    %37 = vector.load %arg6[%c0_17, %c0_18, %c0_19] : memref<1x1x32xf32, #tpu.memory_space<vmem>>, vector<1x1x32xf32>
    %38 = vector.shape_cast %37 : vector<1x1x32xf32> to vector<32xf32>
    %39 = vector.shape_cast %38 : vector<32xf32> to vector<1x32xf32>
    %40 = vector.broadcast %39 : vector<1x32xf32> to vector<16x32xf32>
    %41 = arith.addf %36, %40 : vector<16x32xf32>
    %c0_20 = arith.constant 0 : index
    %c0_21 = arith.constant 0 : index
    %c0_22 = arith.constant 0 : index
    %42 = vector.load %arg7[%c0_20, %c0_21, %c0_22] : memref<1x32x32xbf16, #tpu.memory_space<vmem>>, vector<1x32x32xbf16>
    %43 = vector.shape_cast %42 : vector<1x32x32xbf16> to vector<32x32xbf16>
    %cst_23 = arith.constant dense<0.000000e+00> : vector<16x32xf32>
    %44 = tpu.matmul %33, %43, %cst_23 {dimension_numbers = #tpu.dot_dimension_numbers<[1], [0], [0], [1], [0, 0, 1, 1], [], []>} : vector<16x32xbf16>, vector<32x32xbf16>, vector<16x32xf32> -> vector<16x32xf32>
    %c0_24 = arith.constant 0 : index
    %c0_25 = arith.constant 0 : index
    %c0_26 = arith.constant 0 : index
    %45 = vector.load %arg8[%c0_24, %c0_25, %c0_26] : memref<1x1x32xf32, #tpu.memory_space<vmem>>, vector<1x1x32xf32>
    %46 = vector.shape_cast %45 : vector<1x1x32xf32> to vector<32xf32>
    %47 = vector.shape_cast %46 : vector<32xf32> to vector<1x32xf32>
    %48 = vector.broadcast %47 : vector<1x32xf32> to vector<16x32xf32>
    %49 = arith.addf %44, %48 : vector<16x32xf32>
    %c0_27 = arith.constant 0 : index
    %c0_28 = arith.constant 0 : index
    %c0_29 = arith.constant 0 : index
    %50 = vector.load %arg9[%c0_27, %c0_28, %c0_29] : memref<1x32x32xbf16, #tpu.memory_space<vmem>>, vector<1x32x32xbf16>
    %51 = vector.shape_cast %50 : vector<1x32x32xbf16> to vector<32x32xbf16>
    %cst_30 = arith.constant dense<0.000000e+00> : vector<16x32xf32>
    %52 = tpu.matmul %33, %51, %cst_30 {dimension_numbers = #tpu.dot_dimension_numbers<[1], [0], [0], [1], [0, 0, 1, 1], [], []>} : vector<16x32xbf16>, vector<32x32xbf16>, vector<16x32xf32> -> vector<16x32xf32>
    %c0_31 = arith.constant 0 : index
    %c0_32 = arith.constant 0 : index
    %c0_33 = arith.constant 0 : index
    %53 = vector.load %arg10[%c0_31, %c0_32, %c0_33] : memref<1x1x32xf32, #tpu.memory_space<vmem>>, vector<1x1x32xf32>
    %54 = vector.shape_cast %53 : vector<1x1x32xf32> to vector<32xf32>
    %55 = vector.shape_cast %54 : vector<32xf32> to vector<1x32xf32>
    %56 = vector.broadcast %55 : vector<1x32xf32> to vector<16x32xf32>
    %57 = arith.addf %52, %56 : vector<16x32xf32>
    %cst_34 = arith.constant 0.353553385 : f32
    %58 = vector.broadcast %cst_34 : f32 to vector<16x32xf32>
    %59 = arith.mulf %41, %58 : vector<16x32xf32>
    %60 = vector.shape_cast %59 : vector<16x32xf32> to vector<2x8x32xf32>
    %61 = arith.truncf %60 : vector<2x8x32xf32> to vector<2x8x32xbf16>
    %62 = vector.shape_cast %49 : vector<16x32xf32> to vector<2x8x32xf32>
    %63 = arith.truncf %62 : vector<2x8x32xf32> to vector<2x8x32xbf16>
    %64 = vector.shape_cast %57 : vector<16x32xf32> to vector<2x8x32xf32>
    %65 = arith.truncf %64 : vector<2x8x32xf32> to vector<2x8x32xbf16>
    %66 = tpu.iota {dimensions = array<i32: 0>} : vector<8x8xi32>
    %67 = tpu.iota {dimensions = array<i32: 1>} : vector<8x8xi32>
    %68 = arith.cmpi sle, %67, %66 : vector<8x8xi32>
    %cst_35 = arith.constant 0.000000e+00 : f32
    %cst_36 = arith.constant -1.000000e+30 : f32
    %69 = vector.broadcast %cst_35 : f32 to vector<8x8xf32>
    %70 = vector.broadcast %cst_36 : f32 to vector<8x8xf32>
    %71 = arith.select %68, %69, %70 : vector<8x8xi1>, vector<8x8xf32>
    %c0_37 = arith.constant 0 : index
    %c0_38 = arith.constant 0 : index
    %c0_39 = arith.constant 0 : index
    %72 = vector.load %arg11[%c0_37, %c0_38, %c0_39] : memref<1x32x32xbf16, #tpu.memory_space<vmem>>, vector<1x32x32xbf16>
    %73 = vector.shape_cast %72 : vector<1x32x32xbf16> to vector<32x32xbf16>
    %cst_40 = arith.constant 0.000000e+00 : f32
    %74 = vector.broadcast %cst_40 : f32 to vector<16x32xf32>
    %75 = vector.extract_strided_slice %61 {offsets = [0, 0, 0], sizes = [2, 8, 8], strides = [1, 1, 1]} : vector<2x8x32xbf16> to vector<2x8x8xbf16>
    %76 = vector.extract_strided_slice %63 {offsets = [0, 0, 0], sizes = [2, 8, 8], strides = [1, 1, 1]} : vector<2x8x32xbf16> to vector<2x8x8xbf16>
    "tpu.trace_start"() <{level = 10 : i32, message = "bqd,bkd->bqk"}> : () -> ()
    %cst_41 = arith.constant dense<0.000000e+00> : vector<2x8x8xf32>
    %77 = tpu.matmul %75, %76, %cst_41 {dimension_numbers = #tpu.dot_dimension_numbers<[2], [2], [1], [1], [0, 0, 0, 1, 1, 1], [0], [0]>} : vector<2x8x8xbf16>, vector<2x8x8xbf16>, vector<2x8x8xf32> -> vector<2x8x8xf32>
    "tpu.trace_stop"() : () -> ()
    %78 = vector.shape_cast %71 : vector<8x8xf32> to vector<1x8x8xf32>
    %79 = vector.broadcast %78 : vector<1x8x8xf32> to vector<2x8x8xf32>
    %80 = arith.addf %77, %79 : vector<2x8x8xf32>
    %cst_42 = arith.constant dense<0xFF800000> : vector<2x8xf32>
    %81 = vector.multi_reduction <maximumf>, %80, %cst_42 [2] : vector<2x8x8xf32> to vector<2x8xf32>
    %82 = vector.shape_cast %81 : vector<2x8xf32> to vector<2x8x1xf32>
    %83 = vector.broadcast %82 : vector<2x8x1xf32> to vector<2x8x8xf32>
    %84 = arith.subf %80, %83 : vector<2x8x8xf32>
    %85 = math.exp %84 : vector<2x8x8xf32>
    %cst_43 = arith.constant dense<0.000000e+00> : vector<2x8xf32>
    %86 = vector.multi_reduction <add>, %85, %cst_43 [2] : vector<2x8x8xf32> to vector<2x8xf32>
    %87 = vector.shape_cast %86 : vector<2x8xf32> to vector<2x8x1xf32>
    %88 = vector.broadcast %87 : vector<2x8x1xf32> to vector<2x8x8xf32>
    %89 = arith.divf %85, %88 : vector<2x8x8xf32>
    %90 = arith.truncf %89 : vector<2x8x8xf32> to vector<2x8x8xbf16>
    %91 = vector.extract_strided_slice %65 {offsets = [0, 0, 0], sizes = [2, 8, 8], strides = [1, 1, 1]} : vector<2x8x32xbf16> to vector<2x8x8xbf16>
    "tpu.trace_start"() <{level = 10 : i32, message = "bqk,bkd->bqd"}> : () -> ()
    %cst_44 = arith.constant dense<0.000000e+00> : vector<2x8x8xf32>
    %92 = tpu.matmul %90, %91, %cst_44 {dimension_numbers = #tpu.dot_dimension_numbers<[2], [1], [1], [2], [0, 0, 0, 1, 1, 2], [0], [0]>} : vector<2x8x8xbf16>, vector<2x8x8xbf16>, vector<2x8x8xf32> -> vector<2x8x8xf32>
    "tpu.trace_stop"() : () -> ()
    %93 = vector.shape_cast %92 : vector<2x8x8xf32> to vector<16x8xf32>
    %94 = arith.truncf %93 : vector<16x8xf32> to vector<16x8xbf16>
    %95 = vector.extract_strided_slice %73 {offsets = [0, 0], sizes = [8, 32], strides = [1, 1]} : vector<32x32xbf16> to vector<8x32xbf16>
    %cst_45 = arith.constant dense<0.000000e+00> : vector<16x32xf32>
    %96 = tpu.matmul %94, %95, %cst_45 {dimension_numbers = #tpu.dot_dimension_numbers<[1], [0], [0], [1], [0, 0, 1, 1], [], []>} : vector<16x8xbf16>, vector<8x32xbf16>, vector<16x32xf32> -> vector<16x32xf32>
    %97 = arith.addf %74, %96 : vector<16x32xf32>
    %98 = vector.extract_strided_slice %61 {offsets = [0, 0, 8], sizes = [2, 8, 8], strides = [1, 1, 1]} : vector<2x8x32xbf16> to vector<2x8x8xbf16>
    %99 = vector.extract_strided_slice %63 {offsets = [0, 0, 8], sizes = [2, 8, 8], strides = [1, 1, 1]} : vector<2x8x32xbf16> to vector<2x8x8xbf16>
    "tpu.trace_start"() <{level = 10 : i32, message = "bqd,bkd->bqk"}> : () -> ()
    %cst_46 = arith.constant dense<0.000000e+00> : vector<2x8x8xf32>
    %100 = tpu.matmul %98, %99, %cst_46 {dimension_numbers = #tpu.dot_dimension_numbers<[2], [2], [1], [1], [0, 0, 0, 1, 1, 1], [0], [0]>} : vector<2x8x8xbf16>, vector<2x8x8xbf16>, vector<2x8x8xf32> -> vector<2x8x8xf32>
    "tpu.trace_stop"() : () -> ()
    %101 = vector.shape_cast %71 : vector<8x8xf32> to vector<1x8x8xf32>
    %102 = vector.broadcast %101 : vector<1x8x8xf32> to vector<2x8x8xf32>
    %103 = arith.addf %100, %102 : vector<2x8x8xf32>
    %cst_47 = arith.constant dense<0xFF800000> : vector<2x8xf32>
    %104 = vector.multi_reduction <maximumf>, %103, %cst_47 [2] : vector<2x8x8xf32> to vector<2x8xf32>
    %105 = vector.shape_cast %104 : vector<2x8xf32> to vector<2x8x1xf32>
    %106 = vector.broadcast %105 : vector<2x8x1xf32> to vector<2x8x8xf32>
    %107 = arith.subf %103, %106 : vector<2x8x8xf32>
    %108 = math.exp %107 : vector<2x8x8xf32>
    %cst_48 = arith.constant dense<0.000000e+00> : vector<2x8xf32>
    %109 = vector.multi_reduction <add>, %108, %cst_48 [2] : vector<2x8x8xf32> to vector<2x8xf32>
    %110 = vector.shape_cast %109 : vector<2x8xf32> to vector<2x8x1xf32>
    %111 = vector.broadcast %110 : vector<2x8x1xf32> to vector<2x8x8xf32>
    %112 = arith.divf %108, %111 : vector<2x8x8xf32>
    %113 = arith.truncf %112 : vector<2x8x8xf32> to vector<2x8x8xbf16>
    %114 = vector.extract_strided_slice %65 {offsets = [0, 0, 8], sizes = [2, 8, 8], strides = [1, 1, 1]} : vector<2x8x32xbf16> to vector<2x8x8xbf16>
    "tpu.trace_start"() <{level = 10 : i32, message = "bqk,bkd->bqd"}> : () -> ()
    %cst_49 = arith.constant dense<0.000000e+00> : vector<2x8x8xf32>
    %115 = tpu.matmul %113, %114, %cst_49 {dimension_numbers = #tpu.dot_dimension_numbers<[2], [1], [1], [2], [0, 0, 0, 1, 1, 2], [0], [0]>} : vector<2x8x8xbf16>, vector<2x8x8xbf16>, vector<2x8x8xf32> -> vector<2x8x8xf32>
    "tpu.trace_stop"() : () -> ()
    %116 = vector.shape_cast %115 : vector<2x8x8xf32> to vector<16x8xf32>
    %117 = arith.truncf %116 : vector<16x8xf32> to vector<16x8xbf16>
    %118 = vector.extract_strided_slice %73 {offsets = [8, 0], sizes = [8, 32], strides = [1, 1]} : vector<32x32xbf16> to vector<8x32xbf16>
    %cst_50 = arith.constant dense<0.000000e+00> : vector<16x32xf32>
    %119 = tpu.matmul %117, %118, %cst_50 {dimension_numbers = #tpu.dot_dimension_numbers<[1], [0], [0], [1], [0, 0, 1, 1], [], []>} : vector<16x8xbf16>, vector<8x32xbf16>, vector<16x32xf32> -> vector<16x32xf32>
    %120 = arith.addf %97, %119 : vector<16x32xf32>
    %121 = vector.extract_strided_slice %61 {offsets = [0, 0, 16], sizes = [2, 8, 8], strides = [1, 1, 1]} : vector<2x8x32xbf16> to vector<2x8x8xbf16>
    %122 = vector.extract_strided_slice %63 {offsets = [0, 0, 16], sizes = [2, 8, 8], strides = [1, 1, 1]} : vector<2x8x32xbf16> to vector<2x8x8xbf16>
    "tpu.trace_start"() <{level = 10 : i32, message = "bqd,bkd->bqk"}> : () -> ()
    %cst_51 = arith.constant dense<0.000000e+00> : vector<2x8x8xf32>
    %123 = tpu.matmul %121, %122, %cst_51 {dimension_numbers = #tpu.dot_dimension_numbers<[2], [2], [1], [1], [0, 0, 0, 1, 1, 1], [0], [0]>} : vector<2x8x8xbf16>, vector<2x8x8xbf16>, vector<2x8x8xf32> -> vector<2x8x8xf32>
    "tpu.trace_stop"() : () -> ()
    %124 = vector.shape_cast %71 : vector<8x8xf32> to vector<1x8x8xf32>
    %125 = vector.broadcast %124 : vector<1x8x8xf32> to vector<2x8x8xf32>
    %126 = arith.addf %123, %125 : vector<2x8x8xf32>
    %cst_52 = arith.constant dense<0xFF800000> : vector<2x8xf32>
    %127 = vector.multi_reduction <maximumf>, %126, %cst_52 [2] : vector<2x8x8xf32> to vector<2x8xf32>
    %128 = vector.shape_cast %127 : vector<2x8xf32> to vector<2x8x1xf32>
    %129 = vector.broadcast %128 : vector<2x8x1xf32> to vector<2x8x8xf32>
    %130 = arith.subf %126, %129 : vector<2x8x8xf32>
    %131 = math.exp %130 : vector<2x8x8xf32>
    %cst_53 = arith.constant dense<0.000000e+00> : vector<2x8xf32>
    %132 = vector.multi_reduction <add>, %131, %cst_53 [2] : vector<2x8x8xf32> to vector<2x8xf32>
    %133 = vector.shape_cast %132 : vector<2x8xf32> to vector<2x8x1xf32>
    %134 = vector.broadcast %133 : vector<2x8x1xf32> to vector<2x8x8xf32>
    %135 = arith.divf %131, %134 : vector<2x8x8xf32>
    %136 = arith.truncf %135 : vector<2x8x8xf32> to vector<2x8x8xbf16>
    %137 = vector.extract_strided_slice %65 {offsets = [0, 0, 16], sizes = [2, 8, 8], strides = [1, 1, 1]} : vector<2x8x32xbf16> to vector<2x8x8xbf16>
    "tpu.trace_start"() <{level = 10 : i32, message = "bqk,bkd->bqd"}> : () -> ()
    %cst_54 = arith.constant dense<0.000000e+00> : vector<2x8x8xf32>
    %138 = tpu.matmul %136, %137, %cst_54 {dimension_numbers = #tpu.dot_dimension_numbers<[2], [1], [1], [2], [0, 0, 0, 1, 1, 2], [0], [0]>} : vector<2x8x8xbf16>, vector<2x8x8xbf16>, vector<2x8x8xf32> -> vector<2x8x8xf32>
    "tpu.trace_stop"() : () -> ()
    %139 = vector.shape_cast %138 : vector<2x8x8xf32> to vector<16x8xf32>
    %140 = arith.truncf %139 : vector<16x8xf32> to vector<16x8xbf16>
    %141 = vector.extract_strided_slice %73 {offsets = [16, 0], sizes = [8, 32], strides = [1, 1]} : vector<32x32xbf16> to vector<8x32xbf16>
    %cst_55 = arith.constant dense<0.000000e+00> : vector<16x32xf32>
    %142 = tpu.matmul %140, %141, %cst_55 {dimension_numbers = #tpu.dot_dimension_numbers<[1], [0], [0], [1], [0, 0, 1, 1], [], []>} : vector<16x8xbf16>, vector<8x32xbf16>, vector<16x32xf32> -> vector<16x32xf32>
    %143 = arith.addf %120, %142 : vector<16x32xf32>
    %144 = vector.extract_strided_slice %61 {offsets = [0, 0, 24], sizes = [2, 8, 8], strides = [1, 1, 1]} : vector<2x8x32xbf16> to vector<2x8x8xbf16>
    %145 = vector.extract_strided_slice %63 {offsets = [0, 0, 24], sizes = [2, 8, 8], strides = [1, 1, 1]} : vector<2x8x32xbf16> to vector<2x8x8xbf16>
    "tpu.trace_start"() <{level = 10 : i32, message = "bqd,bkd->bqk"}> : () -> ()
    %cst_56 = arith.constant dense<0.000000e+00> : vector<2x8x8xf32>
    %146 = tpu.matmul %144, %145, %cst_56 {dimension_numbers = #tpu.dot_dimension_numbers<[2], [2], [1], [1], [0, 0, 0, 1, 1, 1], [0], [0]>} : vector<2x8x8xbf16>, vector<2x8x8xbf16>, vector<2x8x8xf32> -> vector<2x8x8xf32>
    "tpu.trace_stop"() : () -> ()
    %147 = vector.shape_cast %71 : vector<8x8xf32> to vector<1x8x8xf32>
    %148 = vector.broadcast %147 : vector<1x8x8xf32> to vector<2x8x8xf32>
    %149 = arith.addf %146, %148 : vector<2x8x8xf32>
    %cst_57 = arith.constant dense<0xFF800000> : vector<2x8xf32>
    %150 = vector.multi_reduction <maximumf>, %149, %cst_57 [2] : vector<2x8x8xf32> to vector<2x8xf32>
    %151 = vector.shape_cast %150 : vector<2x8xf32> to vector<2x8x1xf32>
    %152 = vector.broadcast %151 : vector<2x8x1xf32> to vector<2x8x8xf32>
    %153 = arith.subf %149, %152 : vector<2x8x8xf32>
    %154 = math.exp %153 : vector<2x8x8xf32>
    %cst_58 = arith.constant dense<0.000000e+00> : vector<2x8xf32>
    %155 = vector.multi_reduction <add>, %154, %cst_58 [2] : vector<2x8x8xf32> to vector<2x8xf32>
    %156 = vector.shape_cast %155 : vector<2x8xf32> to vector<2x8x1xf32>
    %157 = vector.broadcast %156 : vector<2x8x1xf32> to vector<2x8x8xf32>
    %158 = arith.divf %154, %157 : vector<2x8x8xf32>
    %159 = arith.truncf %158 : vector<2x8x8xf32> to vector<2x8x8xbf16>
    %160 = vector.extract_strided_slice %65 {offsets = [0, 0, 24], sizes = [2, 8, 8], strides = [1, 1, 1]} : vector<2x8x32xbf16> to vector<2x8x8xbf16>
    "tpu.trace_start"() <{level = 10 : i32, message = "bqk,bkd->bqd"}> : () -> ()
    %cst_59 = arith.constant dense<0.000000e+00> : vector<2x8x8xf32>
    %161 = tpu.matmul %159, %160, %cst_59 {dimension_numbers = #tpu.dot_dimension_numbers<[2], [1], [1], [2], [0, 0, 0, 1, 1, 2], [0], [0]>} : vector<2x8x8xbf16>, vector<2x8x8xbf16>, vector<2x8x8xf32> -> vector<2x8x8xf32>
    "tpu.trace_stop"() : () -> ()
    %162 = vector.shape_cast %161 : vector<2x8x8xf32> to vector<16x8xf32>
    %163 = arith.truncf %162 : vector<16x8xf32> to vector<16x8xbf16>
    %164 = vector.extract_strided_slice %73 {offsets = [24, 0], sizes = [8, 32], strides = [1, 1]} : vector<32x32xbf16> to vector<8x32xbf16>
    %cst_60 = arith.constant dense<0.000000e+00> : vector<16x32xf32>
    %165 = tpu.matmul %163, %164, %cst_60 {dimension_numbers = #tpu.dot_dimension_numbers<[1], [0], [0], [1], [0, 0, 1, 1], [], []>} : vector<16x8xbf16>, vector<8x32xbf16>, vector<16x32xf32> -> vector<16x32xf32>
    %166 = arith.addf %143, %165 : vector<16x32xf32>
    %c0_61 = arith.constant 0 : index
    %c0_62 = arith.constant 0 : index
    %c0_63 = arith.constant 0 : index
    %167 = vector.load %arg12[%c0_61, %c0_62, %c0_63] : memref<1x1x32xf32, #tpu.memory_space<vmem>>, vector<1x1x32xf32>
    %168 = vector.shape_cast %167 : vector<1x1x32xf32> to vector<32xf32>
    %169 = vector.shape_cast %168 : vector<32xf32> to vector<1x32xf32>
    %170 = vector.broadcast %169 : vector<1x32xf32> to vector<16x32xf32>
    %171 = arith.addf %166, %170 : vector<16x32xf32>
    %172 = vector.shape_cast %171 : vector<16x32xf32> to vector<2x8x32xf32>
    %173 = arith.addf %3, %172 : vector<2x8x32xf32>
    %c0_64 = arith.constant 0 : index
    %c0_65 = arith.constant 0 : index
    %c0_66 = arith.constant 0 : index
    %174 = vector.load %arg13[%c0_64, %c0_65, %c0_66] : memref<1x1x32xf32, #tpu.memory_space<vmem>>, vector<1x1x32xf32>
    %175 = vector.shape_cast %174 : vector<1x1x32xf32> to vector<32xf32>
    %c0_67 = arith.constant 0 : index
    %c0_68 = arith.constant 0 : index
    %c0_69 = arith.constant 0 : index
    %176 = vector.load %arg14[%c0_67, %c0_68, %c0_69] : memref<1x1x32xf32, #tpu.memory_space<vmem>>, vector<1x1x32xf32>
    %177 = vector.shape_cast %176 : vector<1x1x32xf32> to vector<32xf32>
    %cst_70 = arith.constant dense<0.000000e+00> : vector<2x8xf32>
    %178 = vector.multi_reduction <add>, %173, %cst_70 [2] : vector<2x8x32xf32> to vector<2x8xf32>
    %179 = vector.shape_cast %178 : vector<2x8xf32> to vector<2x8x1xf32>
    %cst_71 = arith.constant 3.200000e+01 : f32
    %180 = vector.broadcast %cst_71 : f32 to vector<2x8x1xf32>
    %181 = arith.divf %179, %180 : vector<2x8x1xf32>
    %182 = vector.broadcast %181 : vector<2x8x1xf32> to vector<2x8x32xf32>
    %183 = arith.subf %173, %182 : vector<2x8x32xf32>
    %184 = arith.mulf %183, %183 : vector<2x8x32xf32>
    %cst_72 = arith.constant dense<0.000000e+00> : vector<2x8xf32>
    %185 = vector.multi_reduction <add>, %184, %cst_72 [2] : vector<2x8x32xf32> to vector<2x8xf32>
    %186 = vector.shape_cast %185 : vector<2x8xf32> to vector<2x8x1xf32>
    %cst_73 = arith.constant 3.200000e+01 : f32
    %187 = vector.broadcast %cst_73 : f32 to vector<2x8x1xf32>
    %188 = arith.divf %186, %187 : vector<2x8x1xf32>
    %189 = vector.broadcast %181 : vector<2x8x1xf32> to vector<2x8x32xf32>
    %190 = arith.subf %173, %189 : vector<2x8x32xf32>
    %cst_74 = arith.constant 9.99999974E-6 : f32
    %191 = vector.broadcast %cst_74 : f32 to vector<2x8x1xf32>
    %192 = arith.addf %188, %191 : vector<2x8x1xf32>
    %193 = math.rsqrt %192 : vector<2x8x1xf32>
    %194 = vector.broadcast %193 : vector<2x8x1xf32> to vector<2x8x32xf32>
    %195 = arith.mulf %190, %194 : vector<2x8x32xf32>
    %196 = vector.shape_cast %175 : vector<32xf32> to vector<1x1x32xf32>
    %197 = vector.broadcast %196 : vector<1x1x32xf32> to vector<2x8x32xf32>
    %198 = arith.mulf %195, %197 : vector<2x8x32xf32>
    %199 = vector.shape_cast %177 : vector<32xf32> to vector<1x1x32xf32>
    %200 = vector.broadcast %199 : vector<1x1x32xf32> to vector<2x8x32xf32>
    %201 = arith.addf %198, %200 : vector<2x8x32xf32>
    %202 = vector.shape_cast %201 : vector<2x8x32xf32> to vector<16x32xf32>
    %203 = arith.truncf %202 : vector<16x32xf32> to vector<16x32xbf16>
    %c0_75 = arith.constant 0 : index
    %c0_76 = arith.constant 0 : index
    %c0_77 = arith.constant 0 : index
    %204 = vector.load %arg15[%c0_75, %c0_76, %c0_77] : memref<1x32x128xbf16, #tpu.memory_space<vmem>>, vector<1x32x128xbf16>
    %205 = vector.shape_cast %204 : vector<1x32x128xbf16> to vector<32x128xbf16>
    %cst_78 = arith.constant dense<0.000000e+00> : vector<16x128xf32>
    %206 = tpu.matmul %203, %205, %cst_78 {dimension_numbers = #tpu.dot_dimension_numbers<[1], [0], [0], [1], [0, 0, 1, 1], [], []>} : vector<16x32xbf16>, vector<32x128xbf16>, vector<16x128xf32> -> vector<16x128xf32>
    %c0_79 = arith.constant 0 : index
    %c0_80 = arith.constant 0 : index
    %c0_81 = arith.constant 0 : index
    %207 = vector.load %arg16[%c0_79, %c0_80, %c0_81] : memref<1x1x128xf32, #tpu.memory_space<vmem>>, vector<1x1x128xf32>
    %208 = vector.shape_cast %207 : vector<1x1x128xf32> to vector<128xf32>
    %209 = vector.shape_cast %208 : vector<128xf32> to vector<1x128xf32>
    %210 = vector.broadcast %209 : vector<1x128xf32> to vector<16x128xf32>
    %211 = arith.addf %206, %210 : vector<16x128xf32>
    %cst_82 = arith.constant 1.702000e+00 : f32
    %212 = vector.broadcast %cst_82 : f32 to vector<16x128xf32>
    %213 = arith.mulf %212, %211 : vector<16x128xf32>
    %214 = arith.negf %213 : vector<16x128xf32>
    %215 = math.exp %214 : vector<16x128xf32>
    %cst_83 = arith.constant 1.000000e+00 : f32
    %216 = vector.broadcast %cst_83 : f32 to vector<16x128xf32>
    %217 = arith.addf %216, %215 : vector<16x128xf32>
    %218 = arith.divf %216, %217 : vector<16x128xf32>
    %219 = arith.mulf %211, %218 : vector<16x128xf32>
    %220 = arith.truncf %219 : vector<16x128xf32> to vector<16x128xbf16>
    %c0_84 = arith.constant 0 : index
    %c0_85 = arith.constant 0 : index
    %c0_86 = arith.constant 0 : index
    %221 = vector.load %arg17[%c0_84, %c0_85, %c0_86] : memref<1x128x32xbf16, #tpu.memory_space<vmem>>, vector<1x128x32xbf16>
    %222 = vector.shape_cast %221 : vector<1x128x32xbf16> to vector<128x32xbf16>
    %cst_87 = arith.constant dense<0.000000e+00> : vector<16x32xf32>
    %223 = tpu.matmul %220, %222, %cst_87 {dimension_numbers = #tpu.dot_dimension_numbers<[1], [0], [0], [1], [0, 0, 1, 1], [], []>} : vector<16x128xbf16>, vector<128x32xbf16>, vector<16x32xf32> -> vector<16x32xf32>
    %c0_88 = arith.constant 0 : index
    %c0_89 = arith.constant 0 : index
    %c0_90 = arith.constant 0 : index
    %224 = vector.load %arg18[%c0_88, %c0_89, %c0_90] : memref<1x1x32xf32, #tpu.memory_space<vmem>>, vector<1x1x32xf32>
    %225 = vector.shape_cast %224 : vector<1x1x32xf32> to vector<32xf32>
    %226 = vector.shape_cast %225 : vector<32xf32> to vector<1x32xf32>
    %227 = vector.broadcast %226 : vector<1x32xf32> to vector<16x32xf32>
    %228 = arith.addf %223, %227 : vector<16x32xf32>
    %229 = vector.shape_cast %228 : vector<16x32xf32> to vector<2x8x32xf32>
    %230 = arith.addf %173, %229 : vector<2x8x32xf32>
    %c0_91 = arith.constant 0 : index
    %c0_92 = arith.constant 0 : index
    %c0_93 = arith.constant 0 : index
    %231 = vector.load %arg20[%c0_91, %c0_92, %c0_93] : memref<2x8x32xf32, #tpu.memory_space<vmem>>, vector<2x8x32xf32>
    tpu.vector_store %arg20[%c0_91, %c0_92, %c0_93], %230 {strides = array<i32>} : memref<2x8x32xf32, #tpu.memory_space<vmem>>, vector<2x8x32xf32>,
    %c1_i32 = arith.constant 1 : i32
    %232 = arith.cmpi eq, %arg1, %c1_i32 : i32
    %233 = arith.extui %232 : i1 to i32
    %c0_i32_94 = arith.constant 0 : i32
    %234 = arith.cmpi ne, %233, %c0_i32_94 : i32
    scf.if %234 {
      %c0_95 = arith.constant 0 : index
      %c0_96 = arith.constant 0 : index
      %c0_97 = arith.constant 0 : index
      %235 = vector.load %arg19[%c0_95, %c0_96, %c0_97] : memref<2x8x32xf32, #tpu.memory_space<vmem>>, vector<2x8x32xf32>
      tpu.vector_store %arg19[%c0_95, %c0_96, %c0_97], %230 {strides = array<i32>} : memref<2x8x32xf32, #tpu.memory_space<vmem>>, vector<2x8x32xf32>,
    } else {
    }
    return
  }
  func.func @transform_0(%arg0: i32, %arg1: i32) -> (i32, i32, i32) {
    %c0_i32 = arith.constant 0 : i32
    %c0_i32_0 = arith.constant 0 : i32
    %c0_i32_1 = arith.constant 0 : i32
    return %arg0, %c0_i32, %c0_i32_0 : i32, i32, i32
  }
  func.func @transform_1(%arg0: i32, %arg1: i32) -> (i32, i32, i32) {
    %c0_i32 = arith.constant 0 : i32
    %c0_i32_0 = arith.constant 0 : i32
    %c0_i32_1 = arith.constant 0 : i32
    return %arg1, %c0_i32, %c0_i32_0 : i32, i32, i32
  }
  func.func @transform_2(%arg0: i32, %arg1: i32) -> (i32, i32, i32) {
    %c0_i32 = arith.constant 0 : i32
    %c0_i32_0 = arith.constant 0 : i32
    %c0_i32_1 = arith.constant 0 : i32
    return %arg1, %c0_i32, %c0_i32_0 : i32, i32, i32
  }
  func.func @transform_3(%arg0: i32, %arg1: i32) -> (i32, i32, i32) {
    %c0_i32 = arith.constant 0 : i32
    %c0_i32_0 = arith.constant 0 : i32
    %c0_i32_1 = arith.constant 0 : i32
    return %arg1, %c0_i32, %c0_i32_0 : i32, i32, i32
  }
  func.func @transform_4(%arg0: i32, %arg1: i32) -> (i32, i32, i32) {
    %c0_i32 = arith.constant 0 : i32
    %c0_i32_0 = arith.constant 0 : i32
    %c0_i32_1 = arith.constant 0 : i32
    return %arg1, %c0_i32, %c0_i32_0 : i32, i32, i32
  }
  func.func @transform_5(%arg0: i32, %arg1: i32) -> (i32, i32, i32) {
    %c0_i32 = arith.constant 0 : i32
    %c0_i32_0 = arith.constant 0 : i32
    %c0_i32_1 = arith.constant 0 : i32
    return %arg1, %c0_i32, %c0_i32_0 : i32, i32, i32
  }
  func.func @transform_6(%arg0: i32, %arg1: i32) -> (i32, i32, i32) {
    %c0_i32 = arith.constant 0 : i32
    %c0_i32_0 = arith.constant 0 : i32
    %c0_i32_1 = arith.constant 0 : i32
    return %arg1, %c0_i32, %c0_i32_0 : i32, i32, i32
  }
  func.func @transform_7(%arg0: i32, %arg1: i32) -> (i32, i32, i32) {
    %c0_i32 = arith.constant 0 : i32
    %c0_i32_0 = arith.constant 0 : i32
    %c0_i32_1 = arith.constant 0 : i32
    return %arg1, %c0_i32, %c0_i32_0 : i32, i32, i32
  }
  func.func @transform_8(%arg0: i32, %arg1: i32) -> (i32, i32, i32) {
    %c0_i32 = arith.constant 0 : i32
    %c0_i32_0 = arith.constant 0 : i32
    %c0_i32_1 = arith.constant 0 : i32
    return %arg1, %c0_i32, %c0_i32_0 : i32, i32, i32
  }
  func.func @transform_9(%arg0: i32, %arg1: i32) -> (i32, i32, i32) {
    %c0_i32 = arith.constant 0 : i32
    %c0_i32_0 = arith.constant 0 : i32
    %c0_i32_1 = arith.constant 0 : i32
    return %arg1, %c0_i32, %c0_i32_0 : i32, i32, i32
  }
  func.func @transform_10(%arg0: i32, %arg1: i32) -> (i32, i32, i32) {
    %c0_i32 = arith.constant 0 : i32
    %c0_i32_0 = arith.constant 0 : i32
    %c0_i32_1 = arith.constant 0 : i32
    return %arg1, %c0_i32, %c0_i32_0 : i32, i32, i32
  }
  func.func @transform_11(%arg0: i32, %arg1: i32) -> (i32, i32, i32) {
    %c0_i32 = arith.constant 0 : i32
    %c0_i32_0 = arith.constant 0 : i32
    %c0_i32_1 = arith.constant 0 : i32
    return %arg1, %c0_i32, %c0_i32_0 : i32, i32, i32
  }
  func.func @transform_12(%arg0: i32, %arg1: i32) -> (i32, i32, i32) {
    %c0_i32 = arith.constant 0 : i32
    %c0_i32_0 = arith.constant 0 : i32
    %c0_i32_1 = arith.constant 0 : i32
    return %arg1, %c0_i32, %c0_i32_0 : i32, i32, i32
  }
  func.func @transform_13(%arg0: i32, %arg1: i32) -> (i32, i32, i32) {
    %c0_i32 = arith.constant 0 : i32
    %c0_i32_0 = arith.constant 0 : i32
    %c0_i32_1 = arith.constant 0 : i32
    return %arg1, %c0_i32, %c0_i32_0 : i32, i32, i32
  }
  func.func @transform_14(%arg0: i32, %arg1: i32) -> (i32, i32, i32) {
    %c0_i32 = arith.constant 0 : i32
    %c0_i32_0 = arith.constant 0 : i32
    %c0_i32_1 = arith.constant 0 : i32
    return %arg1, %c0_i32, %c0_i32_0 : i32, i32, i32
  }
  func.func @transform_15(%arg0: i32, %arg1: i32) -> (i32, i32, i32) {
    %c0_i32 = arith.constant 0 : i32
    %c0_i32_0 = arith.constant 0 : i32
    %c0_i32_1 = arith.constant 0 : i32
    return %arg1, %c0_i32, %c0_i32_0 : i32, i32, i32
  }
  func.func @transform_16(%arg0: i32, %arg1: i32) -> (i32, i32, i32) {
    %c0_i32 = arith.constant 0 : i32
    %c0_i32_0 = arith.constant 0 : i32
    %c0_i32_1 = arith.constant 0 : i32
    return %arg1, %c0_i32, %c0_i32_0 : i32, i32, i32
  }
  func.func @transform_17(%arg0: i32, %arg1: i32) -> (i32, i32, i32) {
    %c0_i32 = arith.constant 0 : i32
    %c0_i32_0 = arith.constant 0 : i32
    %c0_i32_1 = arith.constant 0 : i32
    return %arg0, %c0_i32, %c0_i32_0 : i32, i32, i32
  }
}

</mosaic_0001>

<llo_original>
// kernel: tpu_custom_call.1
$region0: #{tpu_custom_call.1}
  #allocation0 [shape = 'u32[]', space=smem, size = 0x4, offset = 0x4, fixed_abs, tag = 'smem constant byte address 0x4 - core index']
  #allocation1 [shape = 'u32[72,128]{1,0:T(1,128)}', space=vmem, size = 0x9000, scoped, tag = 'internal scratch']
  #allocation2 [shape = 'f32[2,8,32]{2,1,0:T(8,128)}', space=vmem, size = 0x2000, scoped, tag = 'scratch operand']
  %s0 = inlined_call_operand.hbm [shape: f32[2,8,32], index: 0, kind: input, shape index: {}]
  %s1 = inlined_call_operand.hbm [shape: f32[2,1,32], index: 1, kind: input, shape index: {}]
  %s2 = inlined_call_operand.hbm [shape: f32[2,1,32], index: 2, kind: input, shape index: {}]
  %s3 = inlined_call_operand.vmem [shape: bf16[2,32,32], index: 3, kind: input, shape index: {}]
  %s4 = inlined_call_operand.vmem [shape: f32[2,1,32], index: 4, kind: input, shape index: {}]
  %s5 = inlined_call_operand.vmem [shape: bf16[2,32,32], index: 5, kind: input, shape index: {}]
  %s6 = inlined_call_operand.vmem [shape: f32[2,1,32], index: 6, kind: input, shape index: {}]
  %s7 = inlined_call_operand.vmem [shape: bf16[2,32,32], index: 7, kind: input, shape index: {}]
  %s8 = inlined_call_operand.vmem [shape: f32[2,1,32], index: 8, kind: input, shape index: {}]
  %s9 = inlined_call_operand.vmem [shape: bf16[2,32,32], index: 9, kind: input, shape index: {}]
  %s10 = inlined_call_operand.vmem [shape: f32[2,1,32], index: 10, kind: input, shape index: {}]
  %s11 = inlined_call_operand.hbm [shape: f32[2,1,32], index: 11, kind: input, shape index: {}]
  %s12 = inlined_call_operand.vmem [shape: f32[2,1,32], index: 12, kind: input, shape index: {}]
  %s13 = inlined_call_operand.vmem [shape: bf16[2,32,128], index: 13, kind: input, shape index: {}]
  %s14 = inlined_call_operand.vmem [shape: f32[2,1,128], index: 14, kind: input, shape index: {}]
  %s15 = inlined_call_operand.vmem [shape: bf16[2,128,32], index: 15, kind: input, shape index: {}]
  %s16 = inlined_call_operand.vmem [shape: f32[2,1,32], index: 16, kind: input, shape index: {}]
  %s17 = inlined_call_operand.hbm [shape: f32[2,8,32], index: 17, kind: output, shape index: {}]
  %s18 = sld [smem:[#allocation0]]
  $region125: #{tpu_custom_call.1} parent=0
    _
  %s20 = ssub.s32 1, %s18
  %s21 = scalar_select 0, %s20, %s18
  $region1: #{tpu_custom_call.1} parent=0
    #allocation3 [shape = 'u8[8192]{0}', space=vmem, size = 0x2000, scoped, tag = 'input window, operand 0, single buffered']
    #allocation4 [shape = 's32[2]{0}', space=sflag, size = 0x8, scoped, tag = 'scoped memory for tpu_custom_call.1']
    #allocation5 [shape = 's32[2]{0}', space=sflag, size = 0x8, scoped, tag = 'scoped memory for tpu_custom_call.1']
    #allocation6 [shape = 'u8[1024]{0}', space=vmem, size = 0x400, scoped, tag = 'input window, operand 1']
    #allocation7 [shape = 's32[2]{0}', space=sflag, size = 0x8, scoped, tag = 'scoped memory for tpu_custom_call.1']
    #allocation8 [shape = 'u8[1024]{0}', space=vmem, size = 0x400, scoped, tag = 'input window, operand 2']
    #allocation9 [shape = 'u8[1024]{0}', space=vmem, size = 0x400, scoped, tag = 'input window, operand 11']
    #allocation10 [shape = 's32[2]{0}', space=sflag, size = 0x8, scoped, tag = 'scoped memory for tpu_custom_call.1']
    #allocation11 [shape = 'u8[8192]{0}', space=vmem, size = 0x2000, scoped, tag = 'output window, operand 0, single buffered']
    %22 = vsyncpa [#allocation4], 0
    %23 = vsyncpa [#allocation7], 0
    %s24 = scalar_lea.sflag [#allocation7], 1
    %25 = vsyncpa %s24, 0
    %26 = vsyncpa [#allocation10], 0
    %s27 = scalar_lea.sflag [#allocation10], 1
    %28 = vsyncpa %s27, 0
    %29 = vsyncpa [#allocation5], 0
    loop: start=0, step=1, limit=4
    $region2: #{tpu_custom_call.1} parent=1 // loop_pre_header
      _
    $region3: #{tpu_custom_call.1} parent=1 // loop_header
      %s31 = sphi 0, %s35
      %p32 = scmp.ge.s32.totalorder %s31, 4
      %s38 = sphi 0, %s50
      %s39 = sphi 0, %s46
      %s40 = sphi 0, %s38
      %s41 = sphi 0, %s39
      %s42 = sphi 0, %s40
      %s43 = sphi 0, %s41
      %s53 = sphi 0, %s55
      %s56 = sphi 0, %s53
      %s57 = sphi 0, %s56
      %s73 = sphi 0, %s57
      %s79 = sphi 0, %s81
      %s82 = sphi 0, %s79
      %s83 = sphi 0, %s82
      %s99 = sphi 0, %s83
      %s105 = sphi 0, %s107
      %s108 = sphi 0, %s105
      %s109 = sphi 0, %s108
      %s125 = sphi 0, %s109
      %s131 = sphi 0, %s133
      %s134 = sphi 0, %s131
      %s135 = sphi 0, %s134
      %s151 = sphi 0, %s135
      %s157 = sphi 0, %s159
      %s160 = sphi 0, %s157
      %s161 = sphi 0, %s160
      %s177 = sphi 0, %s161
      %s183 = sphi 0, %s185
      %s186 = sphi 0, %s183
      %s187 = sphi 0, %s186
      %s203 = sphi 0, %s187
      %s209 = sphi 0, %s211
      %s212 = sphi 0, %s209
      %s213 = sphi 0, %s212
      %s229 = sphi 0, %s213
      %s235 = sphi 0, %s237
      %s238 = sphi 0, %s235
      %s239 = sphi 0, %s238
      %s255 = sphi 0, %s239
      %s261 = sphi 0, %s263
      %s264 = sphi 0, %s261
      %s265 = sphi 0, %s264
      %s281 = sphi 0, %s265
      %s287 = sphi 0, %s289
      %s290 = sphi 0, %s287
      %s291 = sphi 0, %s290
      %s307 = sphi 0, %s291
      %s313 = sphi 0, %s315
      %s316 = sphi 0, %s313
      %s317 = sphi 0, %s316
      %s333 = sphi 0, %s317
      %s339 = sphi 0, %s341
      %s342 = sphi 0, %s339
      %s343 = sphi 0, %s342
      %s359 = sphi 0, %s343
      %s365 = sphi 0, %s367
      %s368 = sphi 0, %s365
      %s369 = sphi 0, %s368
      %s385 = sphi 0, %s369
      %s391 = sphi 0, %s393
      %s394 = sphi 0, %s391
      %s395 = sphi 0, %s394
      %s411 = sphi 0, %s395
      %s417 = sphi 0, %s419
      %s420 = sphi 0, %s417
      %s421 = sphi 0, %s420
      %s437 = sphi 0, %s421
      %s443 = sphi 0, %s445
      %s446 = sphi 0, %s443
      %s447 = sphi 0, %s446
      %s463 = sphi 0, %s447
      %s469 = sphi 0, %s471
      %s472 = sphi 0, %s469
      %s473 = sphi 0, %s472
      %s489 = sphi 0, %s473
      %s495 = sphi 0, %s497
      %s498 = sphi 0, %s495
      %s499 = sphi 0, %s498
      %s515 = sphi 0, %s499
    $region4: #{tpu_custom_call.1} parent=1 // loop_header_branch
      %34 = sbr.rel (%p32) target = $region8
    $region5: #{tpu_custom_call.1} parent=1 // loop_body
      %s36 = ssub.s32 %s31, 1
      %s37 = ssub.s32 %s31, 2
      %s44 = sadd.s32 1, %s39
      %p45 = scmp.ge.s32.totalorder %s44, 2
      %s46 = scalar_select %p45, 0, %s44
      %s47 = sadd.s32 1, %s38
      %s48 = scalar_select %p45, %s47, %s38
      %p49 = scmp.ge.s32.totalorder %s48, 1
      %s50 = scalar_select %p49, 0, %s48
      %s51 = ssub.s32 %s38, %s50
      %p52 = scmp.eq.s32.totalorder %s51, 0
      %s54 = sadd.s32 %s53, 1
      %s55 = scalar_select %p52, %s53, %s54
      %p58 = pneg %p52
      %p59 = scmp.eq.s32.totalorder %s31, 1
      %p60 = por %p58, %p59
      %p61 = scmp.ne.s32.totalorder %s53, %s56
      %p62 = scmp.eq.s32.totalorder %s31, 0
      %p63 = por %p61, %p62
      %p64 = scmp.ne.s32.totalorder %s53, %s56
      %p65 = scmp.eq.s32.totalorder %s36, 1
      %p66 = por %p64, %p65
      %p67 = scmp.ne.s32.totalorder %s56, %s57
      %p68 = scmp.eq.s32.totalorder %s36, 0
      %p69 = por %p67, %p68
      %p70 = scmp.ne.s32.totalorder %s56, %s57
      %p71 = scmp.eq.s32.totalorder %s37, 1
      %p72 = por %p70, %p71
      %p74 = scmp.ne.s32.totalorder %s57, %s73
      %p75 = scmp.eq.s32.totalorder %s37, 0
      %p76 = por %p74, %p75
      %s77 = ssub.s32 %s39, %s46
      %p78 = scmp.eq.s32.totalorder %s77, 0
      %s80 = sadd.s32 %s79, 1
      %s81 = scalar_select %p78, %s79, %s80
      %p84 = pneg %p78
      %p85 = scmp.eq.s32.totalorder %s31, 1
      %p86 = por %p84, %p85
      %p87 = scmp.ne.s32.totalorder %s79, %s82
      %p88 = scmp.eq.s32.totalorder %s31, 0
      %p89 = por %p87, %p88
      %p90 = scmp.ne.s32.totalorder %s79, %s82
      %p91 = scmp.eq.s32.totalorder %s36, 1
      %p92 = por %p90, %p91
      %p93 = scmp.ne.s32.totalorder %s82, %s83
      %p94 = scmp.eq.s32.totalorder %s36, 0
      %p95 = por %p93, %p94
      %p96 = scmp.ne.s32.totalorder %s82, %s83
      %p97 = scmp.eq.s32.totalorder %s37, 1
      %p98 = por %p96, %p97
      %p100 = scmp.ne.s32.totalorder %s83, %s99
      %p101 = scmp.eq.s32.totalorder %s37, 0
      %p102 = por %p100, %p101
      %s103 = ssub.s32 %s39, %s46
      %p104 = scmp.eq.s32.totalorder %s103, 0
      %s106 = sadd.s32 %s105, 1
      %s107 = scalar_select %p104, %s105, %s106
      %p110 = pneg %p104
      %p111 = scmp.eq.s32.totalorder %s31, 1
      %p112 = por %p110, %p111
      %p113 = scmp.ne.s32.totalorder %s105, %s108
      %p114 = scmp.eq.s32.totalorder %s31, 0
      %p115 = por %p113, %p114
      %p116 = scmp.ne.s32.totalorder %s105, %s108
      %p117 = scmp.eq.s32.totalorder %s36, 1
      %p118 = por %p116, %p117
      %p119 = scmp.ne.s32.totalorder %s108, %s109
      %p120 = scmp.eq.s32.totalorder %s36, 0
      %p121 = por %p119, %p120
      %p122 = scmp.ne.s32.totalorder %s108, %s109
      %p123 = scmp.eq.s32.totalorder %s37, 1
      %p124 = por %p122, %p123
      %p126 = scmp.ne.s32.totalorder %s109, %s125
      %p127 = scmp.eq.s32.totalorder %s37, 0
      %p128 = por %p126, %p127
      %s129 = ssub.s32 %s39, %s46
      %p130 = scmp.eq.s32.totalorder %s129, 0
      %s132 = sadd.s32 %s131, 1
      %s133 = scalar_select %p130, %s131, %s132
      %p136 = pneg %p130
      %p137 = scmp.eq.s32.totalorder %s31, 1
      %p138 = por %p136, %p137
      %p139 = scmp.ne.s32.totalorder %s131, %s134
      %p140 = scmp.eq.s32.totalorder %s31, 0
      %p141 = por %p139, %p140
      %p142 = scmp.ne.s32.totalorder %s131, %s134
      %p143 = scmp.eq.s32.totalorder %s36, 1
      %p144 = por %p142, %p143
      %p145 = scmp.ne.s32.totalorder %s134, %s135
      %p146 = scmp.eq.s32.totalorder %s36, 0
      %p147 = por %p145, %p146
      %p148 = scmp.ne.s32.totalorder %s134, %s135
      %p149 = scmp.eq.s32.totalorder %s37, 1
      %p150 = por %p148, %p149
      %p152 = scmp.ne.s32.totalorder %s135, %s151
      %p153 = scmp.eq.s32.totalorder %s37, 0
      %p154 = por %p152, %p153
      %s155 = ssub.s32 %s39, %s46
      %p156 = scmp.eq.s32.totalorder %s155, 0
      %s158 = sadd.s32 %s157, 1
      %s159 = scalar_select %p156, %s157, %s158
      %p162 = pneg %p156
      %p163 = scmp.eq.s32.totalorder %s31, 1
      %p164 = por %p162, %p163
      %p165 = scmp.ne.s32.totalorder %s157, %s160
      %p166 = scmp.eq.s32.totalorder %s31, 0
      %p167 = por %p165, %p166
      %p168 = scmp.ne.s32.totalorder %s157, %s160
      %p169 = scmp.eq.s32.totalorder %s36, 1
      %p170 = por %p168, %p169
      %p171 = scmp.ne.s32.totalorder %s160, %s161
      %p172 = scmp.eq.s32.totalorder %s36, 0
      %p173 = por %p171, %p172
      %p174 = scmp.ne.s32.totalorder %s160, %s161
      %p175 = scmp.eq.s32.totalorder %s37, 1
      %p176 = por %p174, %p175
      %p178 = scmp.ne.s32.totalorder %s161, %s177
      %p179 = scmp.eq.s32.totalorder %s37, 0
      %p180 = por %p178, %p179
      %s181 = ssub.s32 %s39, %s46
      %p182 = scmp.eq.s32.totalorder %s181, 0
      %s184 = sadd.s32 %s183, 1
      %s185 = scalar_select %p182, %s183, %s184
      %p188 = pneg %p182
      %p189 = scmp.eq.s32.totalorder %s31, 1
      %p190 = por %p188, %p189
      %p191 = scmp.ne.s32.totalorder %s183, %s186
      %p192 = scmp.eq.s32.totalorder %s31, 0
      %p193 = por %p191, %p192
      %p194 = scmp.ne.s32.totalorder %s183, %s186
      %p195 = scmp.eq.s32.totalorder %s36, 1
      %p196 = por %p194, %p195
      %p197 = scmp.ne.s32.totalorder %s186, %s187
      %p198 = scmp.eq.s32.totalorder %s36, 0
      %p199 = por %p197, %p198
      %p200 = scmp.ne.s32.totalorder %s186, %s187
      %p201 = scmp.eq.s32.totalorder %s37, 1
      %p202 = por %p200, %p201
      %p204 = scmp.ne.s32.totalorder %s187, %s203
      %p205 = scmp.eq.s32.totalorder %s37, 0
      %p206 = por %p204, %p205
      %s207 = ssub.s32 %s39, %s46
      %p208 = scmp.eq.s32.totalorder %s207, 0
      %s210 = sadd.s32 %s209, 1
      %s211 = scalar_select %p208, %s209, %s210
      %p214 = pneg %p208
      %p215 = scmp.eq.s32.totalorder %s31, 1
      %p216 = por %p214, %p215
      %p217 = scmp.ne.s32.totalorder %s209, %s212
      %p218 = scmp.eq.s32.totalorder %s31, 0
      %p219 = por %p217, %p218
      %p220 = scmp.ne.s32.totalorder %s209, %s212
      %p221 = scmp.eq.s32.totalorder %s36, 1
      %p222 = por %p220, %p221
      %p223 = scmp.ne.s32.totalorder %s212, %s213
      %p224 = scmp.eq.s32.totalorder %s36, 0
      %p225 = por %p223, %p224
      %p226 = scmp.ne.s32.totalorder %s212, %s213
      %p227 = scmp.eq.s32.totalorder %s37, 1
      %p228 = por %p226, %p227
      %p230 = scmp.ne.s32.totalorder %s213, %s229
      %p231 = scmp.eq.s32.totalorder %s37, 0
      %p232 = por %p230, %p231
      %s233 = ssub.s32 %s39, %s46
      %p234 = scmp.eq.s32.totalorder %s233, 0
      %s236 = sadd.s32 %s235, 1
      %s237 = scalar_select %p234, %s235, %s236
      %p240 = pneg %p234
      %p241 = scmp.eq.s32.totalorder %s31, 1
      %p242 = por %p240, %p241
      %p243 = scmp.ne.s32.totalorder %s235, %s238
      %p244 = scmp.eq.s32.totalorder %s31, 0
      %p245 = por %p243, %p244
      %p246 = scmp.ne.s32.totalorder %s235, %s238
      %p247 = scmp.eq.s32.totalorder %s36, 1
      %p248 = por %p246, %p247
      %p249 = scmp.ne.s32.totalorder %s238, %s239
      %p250 = scmp.eq.s32.totalorder %s36, 0
      %p251 = por %p249, %p250
      %p252 = scmp.ne.s32.totalorder %s238, %s239
      %p253 = scmp.eq.s32.totalorder %s37, 1
      %p254 = por %p252, %p253
      %p256 = scmp.ne.s32.totalorder %s239, %s255
      %p257 = scmp.eq.s32.totalorder %s37, 0
      %p258 = por %p256, %p257
      %s259 = ssub.s32 %s39, %s46
      %p260 = scmp.eq.s32.totalorder %s259, 0
      %s262 = sadd.s32 %s261, 1
      %s263 = scalar_select %p260, %s261, %s262
      %p266 = pneg %p260
      %p267 = scmp.eq.s32.totalorder %s31, 1
      %p268 = por %p266, %p267
      %p269 = scmp.ne.s32.totalorder %s261, %s264
      %p270 = scmp.eq.s32.totalorder %s31, 0
      %p271 = por %p269, %p270
      %p272 = scmp.ne.s32.totalorder %s261, %s264
      %p273 = scmp.eq.s32.totalorder %s36, 1
      %p274 = por %p272, %p273
      %p275 = scmp.ne.s32.totalorder %s264, %s265
      %p276 = scmp.eq.s32.totalorder %s36, 0
      %p277 = por %p275, %p276
      %p278 = scmp.ne.s32.totalorder %s264, %s265
      %p279 = scmp.eq.s32.totalorder %s37, 1
      %p280 = por %p278, %p279
      %p282 = scmp.ne.s32.totalorder %s265, %s281
      %p283 = scmp.eq.s32.totalorder %s37, 0
      %p284 = por %p282, %p283
      %s285 = ssub.s32 %s39, %s46
      %p286 = scmp.eq.s32.totalorder %s285, 0
      %s288 = sadd.s32 %s287, 1
      %s289 = scalar_select %p286, %s287, %s288
      %p292 = pneg %p286
      %p293 = scmp.eq.s32.totalorder %s31, 1
      %p294 = por %p292, %p293
      %p295 = scmp.ne.s32.totalorder %s287, %s290
      %p296 = scmp.eq.s32.totalorder %s31, 0
      %p297 = por %p295, %p296
      %p298 = scmp.ne.s32.totalorder %s287, %s290
      %p299 = scmp.eq.s32.totalorder %s36, 1
      %p300 = por %p298, %p299
      %p301 = scmp.ne.s32.totalorder %s290, %s291
      %p302 = scmp.eq.s32.totalorder %s36, 0
      %p303 = por %p301, %p302
      %p304 = scmp.ne.s32.totalorder %s290, %s291
      %p305 = scmp.eq.s32.totalorder %s37, 1
      %p306 = por %p304, %p305
      %p308 = scmp.ne.s32.totalorder %s291, %s307
      %p309 = scmp.eq.s32.totalorder %s37, 0
      %p310 = por %p308, %p309
      %s311 = ssub.s32 %s39, %s46
      %p312 = scmp.eq.s32.totalorder %s311, 0
      %s314 = sadd.s32 %s313, 1
      %s315 = scalar_select %p312, %s313, %s314
      %p318 = pneg %p312
      %p319 = scmp.eq.s32.totalorder %s31, 1
      %p320 = por %p318, %p319
      %p321 = scmp.ne.s32.totalorder %s313, %s316
      %p322 = scmp.eq.s32.totalorder %s31, 0
      %p323 = por %p321, %p322
      %p324 = scmp.ne.s32.totalorder %s313, %s316
      %p325 = scmp.eq.s32.totalorder %s36, 1
      %p326 = por %p324, %p325
      %p327 = scmp.ne.s32.totalorder %s316, %s317
      %p328 = scmp.eq.s32.totalorder %s36, 0
      %p329 = por %p327, %p328
      %p330 = scmp.ne.s32.totalorder %s316, %s317
      %p331 = scmp.eq.s32.totalorder %s37, 1
      %p332 = por %p330, %p331
      %p334 = scmp.ne.s32.totalorder %s317, %s333
      %p335 = scmp.eq.s32.totalorder %s37, 0
      %p336 = por %p334, %p335
      %s337 = ssub.s32 %s39, %s46
      %p338 = scmp.eq.s32.totalorder %s337, 0
      %s340 = sadd.s32 %s339, 1
      %s341 = scalar_select %p338, %s339, %s340
      %p344 = pneg %p338
      %p345 = scmp.eq.s32.totalorder %s31, 1
      %p346 = por %p344, %p345
      %p347 = scmp.ne.s32.totalorder %s339, %s342
      %p348 = scmp.eq.s32.totalorder %s31, 0
      %p349 = por %p347, %p348
      %p350 = scmp.ne.s32.totalorder %s339, %s342
      %p351 = scmp.eq.s32.totalorder %s36, 1
      %p352 = por %p350, %p351
      %p353 = scmp.ne.s32.totalorder %s342, %s343
      %p354 = scmp.eq.s32.totalorder %s36, 0
      %p355 = por %p353, %p354
      %p356 = scmp.ne.s32.totalorder %s342, %s343
      %p357 = scmp.eq.s32.totalorder %s37, 1
      %p358 = por %p356, %p357
      %p360 = scmp.ne.s32.totalorder %s343, %s359
      %p361 = scmp.eq.s32.totalorder %s37, 0
      %p362 = por %p360, %p361
      %s363 = ssub.s32 %s39, %s46
      %p364 = scmp.eq.s32.totalorder %s363, 0
      %s366 = sadd.s32 %s365, 1
      %s367 = scalar_select %p364, %s365, %s366
      %p370 = pneg %p364
      %p371 = scmp.eq.s32.totalorder %s31, 1
      %p372 = por %p370, %p371
      %p373 = scmp.ne.s32.totalorder %s365, %s368
      %p374 = scmp.eq.s32.totalorder %s31, 0
      %p375 = por %p373, %p374
      %p376 = scmp.ne.s32.totalorder %s365, %s368
      %p377 = scmp.eq.s32.totalorder %s36, 1
      %p378 = por %p376, %p377
      %p379 = scmp.ne.s32.totalorder %s368, %s369
      %p380 = scmp.eq.s32.totalorder %s36, 0
      %p381 = por %p379, %p380
      %p382 = scmp.ne.s32.totalorder %s368, %s369
      %p383 = scmp.eq.s32.totalorder %s37, 1
      %p384 = por %p382, %p383
      %p386 = scmp.ne.s32.totalorder %s369, %s385
      %p387 = scmp.eq.s32.totalorder %s37, 0
      %p388 = por %p386, %p387
      %s389 = ssub.s32 %s39, %s46
      %p390 = scmp.eq.s32.totalorder %s389, 0
      %s392 = sadd.s32 %s391, 1
      %s393 = scalar_select %p390, %s391, %s392
      %p396 = pneg %p390
      %p397 = scmp.eq.s32.totalorder %s31, 1
      %p398 = por %p396, %p397
      %p399 = scmp.ne.s32.totalorder %s391, %s394
      %p400 = scmp.eq.s32.totalorder %s31, 0
      %p401 = por %p399, %p400
      %p402 = scmp.ne.s32.totalorder %s391, %s394
      %p403 = scmp.eq.s32.totalorder %s36, 1
      %p404 = por %p402, %p403
      %p405 = scmp.ne.s32.totalorder %s394, %s395
      %p406 = scmp.eq.s32.totalorder %s36, 0
      %p407 = por %p405, %p406
      %p408 = scmp.ne.s32.totalorder %s394, %s395
      %p409 = scmp.eq.s32.totalorder %s37, 1
      %p410 = por %p408, %p409
      %p412 = scmp.ne.s32.totalorder %s395, %s411
      %p413 = scmp.eq.s32.totalorder %s37, 0
      %p414 = por %p412, %p413
      %s415 = ssub.s32 %s39, %s46
      %p416 = scmp.eq.s32.totalorder %s415, 0
      %s418 = sadd.s32 %s417, 1
      %s419 = scalar_select %p416, %s417, %s418
      %p422 = pneg %p416
      %p423 = scmp.eq.s32.totalorder %s31, 1
      %p424 = por %p422, %p423
      %p425 = scmp.ne.s32.totalorder %s417, %s420
      %p426 = scmp.eq.s32.totalorder %s31, 0
      %p427 = por %p425, %p426
      %p428 = scmp.ne.s32.totalorder %s417, %s420
      %p429 = scmp.eq.s32.totalorder %s36, 1
      %p430 = por %p428, %p429
      %p431 = scmp.ne.s32.totalorder %s420, %s421
      %p432 = scmp.eq.s32.totalorder %s36, 0
      %p433 = por %p431, %p432
      %p434 = scmp.ne.s32.totalorder %s420, %s421
      %p435 = scmp.eq.s32.totalorder %s37, 1
      %p436 = por %p434, %p435
      %p438 = scmp.ne.s32.totalorder %s421, %s437
      %p439 = scmp.eq.s32.totalorder %s37, 0
      %p440 = por %p438, %p439
      %s441 = ssub.s32 %s39, %s46
      %p442 = scmp.eq.s32.totalorder %s441, 0
      %s444 = sadd.s32 %s443, 1
      %s445 = scalar_select %p442, %s443, %s444
      %p448 = pneg %p442
      %p449 = scmp.eq.s32.totalorder %s31, 1
      %p450 = por %p448, %p449
      %p451 = scmp.ne.s32.totalorder %s443, %s446
      %p452 = scmp.eq.s32.totalorder %s31, 0
      %p453 = por %p451, %p452
      %p454 = scmp.ne.s32.totalorder %s443, %s446
      %p455 = scmp.eq.s32.totalorder %s36, 1
      %p456 = por %p454, %p455
      %p457 = scmp.ne.s32.totalorder %s446, %s447
      %p458 = scmp.eq.s32.totalorder %s36, 0
      %p459 = por %p457, %p458
      %p460 = scmp.ne.s32.totalorder %s446, %s447
      %p461 = scmp.eq.s32.totalorder %s37, 1
      %p462 = por %p460, %p461
      %p464 = scmp.ne.s32.totalorder %s447, %s463
      %p465 = scmp.eq.s32.totalorder %s37, 0
      %p466 = por %p464, %p465
      %s467 = ssub.s32 %s39, %s46
      %p468 = scmp.eq.s32.totalorder %s467, 0
      %s470 = sadd.s32 %s469, 1
      %s471 = scalar_select %p468, %s469, %s470
      %p474 = pneg %p468
      %p475 = scmp.eq.s32.totalorder %s31, 1
      %p476 = por %p474, %p475
      %p477 = scmp.ne.s32.totalorder %s469, %s472
      %p478 = scmp.eq.s32.totalorder %s31, 0
      %p479 = por %p477, %p478
      %p480 = scmp.ne.s32.totalorder %s469, %s472
      %p481 = scmp.eq.s32.totalorder %s36, 1
      %p482 = por %p480, %p481
      %p483 = scmp.ne.s32.totalorder %s472, %s473
      %p484 = scmp.eq.s32.totalorder %s36, 0
      %p485 = por %p483, %p484
      %p486 = scmp.ne.s32.totalorder %s472, %s473
      %p487 = scmp.eq.s32.totalorder %s37, 1
      %p488 = por %p486, %p487
      %p490 = scmp.ne.s32.totalorder %s473, %s489
      %p491 = scmp.eq.s32.totalorder %s37, 0
      %p492 = por %p490, %p491
      %s493 = ssub.s32 %s38, %s50
      %p494 = scmp.eq.s32.totalorder %s493, 0
      %s496 = sadd.s32 %s495, 1
      %s497 = scalar_select %p494, %s495, %s496
      %p500 = pneg %p494
      %p501 = scmp.eq.s32.totalorder %s31, 1
      %p502 = por %p500, %p501
      %p503 = scmp.ne.s32.totalorder %s495, %s498
      %p504 = scmp.eq.s32.totalorder %s31, 0
      %p505 = por %p503, %p504
      %p506 = scmp.ne.s32.totalorder %s495, %s498
      %p507 = scmp.eq.s32.totalorder %s36, 1
      %p508 = por %p506, %p507
      %p509 = scmp.ne.s32.totalorder %s498, %s499
      %p510 = scmp.eq.s32.totalorder %s36, 0
      %p511 = por %p509, %p510
      %p512 = scmp.ne.s32.totalorder %s498, %s499
      %p513 = scmp.eq.s32.totalorder %s37, 1
      %p514 = por %p512, %p513
      %p516 = scmp.ne.s32.totalorder %s499, %s515
      %p517 = scmp.eq.s32.totalorder %s37, 0
      %p518 = por %p516, %p517
      %p519 = scmp.le.s32.totalorder 1, %s31
      %p520 = scmp.lt.s32.totalorder %s31, 3
      %p521 = pnand %p519, %p520
      %p522 = pneg %p521
      // Predicated region
      $region9: #{tpu_custom_call.1} parent=5 // pred_check
        _
      $region10: #{tpu_custom_call.1} parent=5 // pred_check_branch
        %524 = sbr.rel (%p521) target = $region12
      $region11: #{tpu_custom_call.1} parent=5 // pred_region
        %s525 = ssub.s32 %s31, 1
        // Predicated region
        $region13: #{tpu_custom_call.1} parent=11 // pred_check
          %p526 = pneg %p69
        $region14: #{tpu_custom_call.1} parent=11 // pred_check_branch
          %528 = sbr.rel (%p526) target = $region16
        $region15: #{tpu_custom_call.1} parent=11 // pred_region
          %s529 = smul.u32 2, %s40
          %531 = vsyncadd [#allocation4], 0
          %s532 = smul.addr %s529, 8
          %s533 = scalar_lea.hbm %s0, %s532
          %s534 = sshll.u32 %s533, 4
          %s535 = int_to_ptr.hbm [resolvable:$true] %s534
          %s536 = sshll.u32 [#allocation3], 4
          %s537 = int_to_ptr.vmem [resolvable:$true] %s536
          %542 = dma.hbm_to_vmem [thread:$0]  %s535, 256, %s537, [#allocation4], 128, 128, 8
        $region16: #{tpu_custom_call.1} parent=11 // pred_fallthru
          _
      $region12: #{tpu_custom_call.1} parent=5 // pred_fallthru
        _
      %p543 = scmp.lt.s32.totalorder %s31, 2
      // Predicated region
      $region17: #{tpu_custom_call.1} parent=5 // pred_check
        %p544 = pneg %p543
      $region18: #{tpu_custom_call.1} parent=5 // pred_check_branch
        %546 = sbr.rel (%p544) target = $region20
      $region19: #{tpu_custom_call.1} parent=5 // pred_region
        // Predicated region
        $region21: #{tpu_custom_call.1} parent=19 // pred_check
          %p547 = pneg %p89
        $region22: #{tpu_custom_call.1} parent=19 // pred_check_branch
          %549 = sbr.rel (%p547) target = $region24
        $region23: #{tpu_custom_call.1} parent=19 // pred_region
          %s550 = sand.u32 %s31, 1
          %s551 = scalar_lea.sflag [#allocation7], %s550
          %s552 = sand.u32 %s79, 1
          %s553 = scalar_lea.vmem [#allocation6], %s552
          %555 = vsyncadd %s551, 0
          %s556 = scalar_lea.hbm %s1, %s39
          %s558 = sshll.u32 %s556, 4
          %s559 = int_to_ptr.hbm [resolvable:$true] %s558
          %s560 = sshll.u32 %s553, 4
          %s561 = int_to_ptr.vmem [resolvable:$true] %s560
          %563 = dma.hbm_to_vmem [thread:$0]  %s559, 16, %s561, %s551
        $region24: #{tpu_custom_call.1} parent=19 // pred_fallthru
          _
        // Predicated region
        $region25: #{tpu_custom_call.1} parent=19 // pred_check
          %p564 = pneg %p115
        $region26: #{tpu_custom_call.1} parent=19 // pred_check_branch
          %566 = sbr.rel (%p564) target = $region28
        $region27: #{tpu_custom_call.1} parent=19 // pred_region
          %s567 = sand.u32 %s31, 1
          %s568 = scalar_lea.sflag [#allocation7], %s567
          %s569 = sand.u32 %s105, 1
          %s570 = scalar_lea.vmem [#allocation8], %s569
          %572 = vsyncadd %s568, 0
          %s573 = scalar_lea.hbm %s2, %s39
          %s575 = sshll.u32 %s573, 4
          %s576 = int_to_ptr.hbm [resolvable:$true] %s575
          %s577 = sshll.u32 %s570, 4
          %s578 = int_to_ptr.vmem [resolvable:$true] %s577
          %580 = dma.hbm_to_vmem [thread:$0]  %s576, 16, %s578, %s568
        $region28: #{tpu_custom_call.1} parent=19 // pred_fallthru
          _
        // Predicated region
        $region29: #{tpu_custom_call.1} parent=19 // pred_check
          %p581 = pneg %p141
        $region30: #{tpu_custom_call.1} parent=19 // pred_check_branch
          %583 = sbr.rel (%p581) target = $region32
        $region31: #{tpu_custom_call.1} parent=19 // pred_region
          %p584 = scmp.lt.s32.totalorder %s39, 1
          %s585 = scalar_select %p584, %s39, 1
          %s586 = smul.addr %s585, 4
          %s587 = smul.addr %s586, 4
          %s588 = scalar_lea.vmem %s3, %s587
        $region32: #{tpu_custom_call.1} parent=19 // pred_fallthru
          _
        // Predicated region
        $region33: #{tpu_custom_call.1} parent=19 // pred_check
          %p589 = pneg %p167
        $region34: #{tpu_custom_call.1} parent=19 // pred_check_branch
          %591 = sbr.rel (%p589) target = $region36
        $region35: #{tpu_custom_call.1} parent=19 // pred_region
          %p592 = scmp.lt.s32.totalorder %s39, 1
          %s593 = scalar_select %p592, %s39, 1
          %s594 = scalar_lea.vmem %s4, %s593
        $region36: #{tpu_custom_call.1} parent=19 // pred_fallthru
          _
        // Predicated region
        $region37: #{tpu_custom_call.1} parent=19 // pred_check
          %p595 = pneg %p193
        $region38: #{tpu_custom_call.1} parent=19 // pred_check_branch
          %597 = sbr.rel (%p595) target = $region40
        $region39: #{tpu_custom_call.1} parent=19 // pred_region
          %p598 = scmp.lt.s32.totalorder %s39, 1
          %s599 = scalar_select %p598, %s39, 1
          %s600 = smul.addr %s599, 4
          %s601 = smul.addr %s600, 4
          %s602 = scalar_lea.vmem %s5, %s601
        $region40: #{tpu_custom_call.1} parent=19 // pred_fallthru
          _
        // Predicated region
        $region41: #{tpu_custom_call.1} parent=19 // pred_check
          %p603 = pneg %p219
        $region42: #{tpu_custom_call.1} parent=19 // pred_check_branch
          %605 = sbr.rel (%p603) target = $region44
        $region43: #{tpu_custom_call.1} parent=19 // pred_region
          %p606 = scmp.lt.s32.totalorder %s39, 1
          %s607 = scalar_select %p606, %s39, 1
          %s608 = scalar_lea.vmem %s6, %s607
        $region44: #{tpu_custom_call.1} parent=19 // pred_fallthru
          _
        // Predicated region
        $region45: #{tpu_custom_call.1} parent=19 // pred_check
          %p609 = pneg %p245
        $region46: #{tpu_custom_call.1} parent=19 // pred_check_branch
          %611 = sbr.rel (%p609) target = $region48
        $region47: #{tpu_custom_call.1} parent=19 // pred_region
          %p612 = scmp.lt.s32.totalorder %s39, 1
          %s613 = scalar_select %p612, %s39, 1
          %s614 = smul.addr %s613, 4
          %s615 = smul.addr %s614, 4
          %s616 = scalar_lea.vmem %s7, %s615
        $region48: #{tpu_custom_call.1} parent=19 // pred_fallthru
          _
        // Predicated region
        $region49: #{tpu_custom_call.1} parent=19 // pred_check
          %p617 = pneg %p271
        $region50: #{tpu_custom_call.1} parent=19 // pred_check_branch
          %619 = sbr.rel (%p617) target = $region52
        $region51: #{tpu_custom_call.1} parent=19 // pred_region
          %p620 = scmp.lt.s32.totalorder %s39, 1
          %s621 = scalar_select %p620, %s39, 1
          %s622 = scalar_lea.vmem %s8, %s621
        $region52: #{tpu_custom_call.1} parent=19 // pred_fallthru
          _
        // Predicated region
        $region53: #{tpu_custom_call.1} parent=19 // pred_check
          %p623 = pneg %p297
        $region54: #{tpu_custom_call.1} parent=19 // pred_check_branch
          %625 = sbr.rel (%p623) target = $region56
        $region55: #{tpu_custom_call.1} parent=19 // pred_region
          %p626 = scmp.lt.s32.totalorder %s39, 1
          %s627 = scalar_select %p626, %s39, 1
          %s628 = smul.addr %s627, 4
          %s629 = smul.addr %s628, 4
          %s630 = scalar_lea.vmem %s9, %s629
        $region56: #{tpu_custom_call.1} parent=19 // pred_fallthru
          _
        // Predicated region
        $region57: #{tpu_custom_call.1} parent=19 // pred_check
          %p631 = pneg %p323
        $region58: #{tpu_custom_call.1} parent=19 // pred_check_branch
          %633 = sbr.rel (%p631) target = $region60
        $region59: #{tpu_custom_call.1} parent=19 // pred_region
          %p634 = scmp.lt.s32.totalorder %s39, 1
          %s635 = scalar_select %p634, %s39, 1
          %s636 = scalar_lea.vmem %s10, %s635
        $region60: #{tpu_custom_call.1} parent=19 // pred_fallthru
          _
        // Predicated region
        $region61: #{tpu_custom_call.1} parent=19 // pred_check
          %p637 = pneg %p349
        $region62: #{tpu_custom_call.1} parent=19 // pred_check_branch
          %639 = sbr.rel (%p637) target = $region64
        $region63: #{tpu_custom_call.1} parent=19 // pred_region
          %s640 = sand.u32 %s339, 1
          %s641 = scalar_lea.sflag [#allocation10], %s640
          %s642 = sand.u32 %s339, 1
          %s643 = scalar_lea.vmem [#allocation9], %s642
          %645 = vsyncadd %s641, 0
          %s646 = scalar_lea.hbm %s11, %s39
          %s648 = sshll.u32 %s646, 4
          %s649 = int_to_ptr.hbm [resolvable:$true] %s648
          %s650 = sshll.u32 %s643, 4
          %s651 = int_to_ptr.vmem [resolvable:$true] %s650
          %653 = dma.hbm_to_vmem [thread:$0]  %s649, 16, %s651, %s641
        $region64: #{tpu_custom_call.1} parent=19 // pred_fallthru
          _
        // Predicated region
        $region65: #{tpu_custom_call.1} parent=19 // pred_check
          %p654 = pneg %p375
        $region66: #{tpu_custom_call.1} parent=19 // pred_check_branch
          %656 = sbr.rel (%p654) target = $region68
        $region67: #{tpu_custom_call.1} parent=19 // pred_region
          %p657 = scmp.lt.s32.totalorder %s39, 1
          %s658 = scalar_select %p657, %s39, 1
          %s659 = scalar_lea.vmem %s12, %s658
        $region68: #{tpu_custom_call.1} parent=19 // pred_fallthru
          _
        // Predicated region
        $region69: #{tpu_custom_call.1} parent=19 // pred_check
          %p660 = pneg %p401
        $region70: #{tpu_custom_call.1} parent=19 // pred_check_branch
          %662 = sbr.rel (%p660) target = $region72
        $region71: #{tpu_custom_call.1} parent=19 // pred_region
          %p663 = scmp.lt.s32.totalorder %s39, 1
          %s664 = scalar_select %p663, %s39, 1
          %s665 = smul.addr %s664, 4
          %s666 = smul.addr %s665, 4
          %s667 = scalar_lea.vmem %s13, %s666
        $region72: #{tpu_custom_call.1} parent=19 // pred_fallthru
          _
        // Predicated region
        $region73: #{tpu_custom_call.1} parent=19 // pred_check
          %p668 = pneg %p427
        $region74: #{tpu_custom_call.1} parent=19 // pred_check_branch
          %670 = sbr.rel (%p668) target = $region76
        $region75: #{tpu_custom_call.1} parent=19 // pred_region
          %p671 = scmp.lt.s32.totalorder %s39, 1
          %s672 = scalar_select %p671, %s39, 1
          %s673 = scalar_lea.vmem %s14, %s672
        $region76: #{tpu_custom_call.1} parent=19 // pred_fallthru
          _
        // Predicated region
        $region77: #{tpu_custom_call.1} parent=19 // pred_check
          %p674 = pneg %p453
        $region78: #{tpu_custom_call.1} parent=19 // pred_check_branch
          %676 = sbr.rel (%p674) target = $region80
        $region79: #{tpu_custom_call.1} parent=19 // pred_region
          %p677 = scmp.lt.s32.totalorder %s39, 1
          %s678 = scalar_select %p677, %s39, 1
          %s679 = smul.addr %s678, 16
          %s680 = smul.addr %s679, 4
          %s681 = scalar_lea.vmem %s15, %s680
        $region80: #{tpu_custom_call.1} parent=19 // pred_fallthru
          _
        // Predicated region
        $region81: #{tpu_custom_call.1} parent=19 // pred_check
          %p682 = pneg %p479
        $region82: #{tpu_custom_call.1} parent=19 // pred_check_branch
          %684 = sbr.rel (%p682) target = $region84
        $region83: #{tpu_custom_call.1} parent=19 // pred_region
          %p685 = scmp.lt.s32.totalorder %s39, 1
          %s686 = scalar_select %p685, %s39, 1
          %s687 = scalar_lea.vmem %s16, %s686
        $region84: #{tpu_custom_call.1} parent=19 // pred_fallthru
          _
      $region20: #{tpu_custom_call.1} parent=5 // pred_fallthru
        _
      %p688 = scmp.le.s32.totalorder 1, %s31
      %p689 = scmp.lt.s32.totalorder %s31, 3
      %p690 = pnand %p688, %p689
      %p691 = pneg %p690
      // Predicated region
      $region85: #{tpu_custom_call.1} parent=5 // pred_check
        _
      $region86: #{tpu_custom_call.1} parent=5 // pred_check_branch
        %693 = sbr.rel (%p690) target = $region88
      $region87: #{tpu_custom_call.1} parent=5 // pred_region
        %s694 = ssub.s32 %s31, 1
        // Predicated region
        $region89: #{tpu_custom_call.1} parent=87 // pred_check
          %p695 = pneg %p69
        $region90: #{tpu_custom_call.1} parent=87 // pred_check_branch
          %697 = sbr.rel (%p695) target = $region92
        $region91: #{tpu_custom_call.1} parent=87 // pred_region
          %699 = dma.done [#allocation4], 256
        $region92: #{tpu_custom_call.1} parent=87 // pred_fallthru
          _
        %s700 = sand.u32 %s36, 1
        %s701 = scalar_lea.sflag [#allocation7], %s700
        %s702 = sand.u32 %s82, 1
        %s703 = scalar_lea.vmem [#allocation6], %s702
        // Predicated region
        $region93: #{tpu_custom_call.1} parent=87 // pred_check
          %p704 = pneg %p95
        $region94: #{tpu_custom_call.1} parent=87 // pred_check_branch
          %706 = sbr.rel (%p704) target = $region96
        $region95: #{tpu_custom_call.1} parent=87 // pred_region
          %708 = dma.done %s701, 16
        $region96: #{tpu_custom_call.1} parent=87 // pred_fallthru
          _
        %s709 = sand.u32 %s36, 1
        %s710 = scalar_lea.sflag [#allocation7], %s709
        %s711 = sand.u32 %s108, 1
        %s712 = scalar_lea.vmem [#allocation8], %s711
        // Predicated region
        $region97: #{tpu_custom_call.1} parent=87 // pred_check
          %p713 = pneg %p121
        $region98: #{tpu_custom_call.1} parent=87 // pred_check_branch
          %715 = sbr.rel (%p713) target = $region100
        $region99: #{tpu_custom_call.1} parent=87 // pred_region
          %717 = dma.done %s710, 16
        $region100: #{tpu_custom_call.1} parent=87 // pred_fallthru
          _
        %s718 = sand.u32 %s342, 1
        %s719 = scalar_lea.sflag [#allocation10], %s718
        %s720 = sand.u32 %s342, 1
        %s721 = scalar_lea.vmem [#allocation9], %s720
        // Predicated region
        $region101: #{tpu_custom_call.1} parent=87 // pred_check
          %p722 = pneg %p355
        $region102: #{tpu_custom_call.1} parent=87 // pred_check_branch
          %724 = sbr.rel (%p722) target = $region104
        $region103: #{tpu_custom_call.1} parent=87 // pred_region
          %726 = dma.done %s719, 16
        $region104: #{tpu_custom_call.1} parent=87 // pred_fallthru
          _
        %p727 = pneg %p69
        %p728 = pneg %p66
        %s729 = sand.u32 %s36, 1
        %s730 = scalar_lea.sflag [#allocation7], %s729
        %s731 = sand.u32 %s82, 1
        %s732 = scalar_lea.vmem [#allocation6], %s731
        %p733 = pneg %p95
        %p734 = pneg %p92
        %s735 = sand.u32 %s36, 1
        %s736 = scalar_lea.sflag [#allocation7], %s735
        %s737 = sand.u32 %s108, 1
        %s738 = scalar_lea.vmem [#allocation8], %s737
        %p739 = pneg %p121
        %p740 = pneg %p118
        %p741 = scmp.lt.s32.totalorder %s41, 1
        %s742 = scalar_select %p741, %s41, 1
        %s743 = smul.addr %s742, 4
        %s744 = smul.addr %s743, 4
        %s745 = scalar_lea.vmem %s3, %s744
        %p746 = pneg %p147
        %p747 = pneg %p144
        %p748 = scmp.lt.s32.totalorder %s41, 1
        %s749 = scalar_select %p748, %s41, 1
        %s750 = scalar_lea.vmem %s4, %s749
        %p751 = pneg %p173
        %p752 = pneg %p170
        %p753 = scmp.lt.s32.totalorder %s41, 1
        %s754 = scalar_select %p753, %s41, 1
        %s755 = smul.addr %s754, 4
        %s756 = smul.addr %s755, 4
        %s757 = scalar_lea.vmem %s5, %s756
        %p758 = pneg %p199
        %p759 = pneg %p196
        %p760 = scmp.lt.s32.totalorder %s41, 1
        %s761 = scalar_select %p760, %s41, 1
        %s762 = scalar_lea.vmem %s6, %s761
        %p763 = pneg %p225
        %p764 = pneg %p222
        %p765 = scmp.lt.s32.totalorder %s41, 1
        %s766 = scalar_select %p765, %s41, 1
        %s767 = smul.addr %s766, 4
        %s768 = smul.addr %s767, 4
        %s769 = scalar_lea.vmem %s7, %s768
        %p770 = pneg %p251
        %p771 = pneg %p248
        %p772 = scmp.lt.s32.totalorder %s41, 1
        %s773 = scalar_select %p772, %s41, 1
        %s774 = scalar_lea.vmem %s8, %s773
        %p775 = pneg %p277
        %p776 = pneg %p274
        %p777 = scmp.lt.s32.totalorder %s41, 1
        %s778 = scalar_select %p777, %s41, 1
        %s779 = smul.addr %s778, 4
        %s780 = smul.addr %s779, 4
        %s781 = scalar_lea.vmem %s9, %s780
        %p782 = pneg %p303
        %p783 = pneg %p300
        %p784 = scmp.lt.s32.totalorder %s41, 1
        %s785 = scalar_select %p784, %s41, 1
        %s786 = scalar_lea.vmem %s10, %s785
        %p787 = pneg %p329
        %p788 = pneg %p326
        %s789 = sand.u32 %s342, 1
        %s790 = scalar_lea.sflag [#allocation10], %s789
        %s791 = sand.u32 %s342, 1
        %s792 = scalar_lea.vmem [#allocation9], %s791
        %p793 = pneg %p355
        %p794 = pneg %p352
        %p795 = scmp.lt.s32.totalorder %s41, 1
        %s796 = scalar_select %p795, %s41, 1
        %s797 = scalar_lea.vmem %s12, %s796
        %p798 = pneg %p381
        %p799 = pneg %p378
        %p800 = scmp.lt.s32.totalorder %s41, 1
        %s801 = scalar_select %p800, %s41, 1
        %s802 = smul.addr %s801, 4
        %s803 = smul.addr %s802, 4
        %s804 = scalar_lea.vmem %s13, %s803
        %p805 = pneg %p407
        %p806 = pneg %p404
        %p807 = scmp.lt.s32.totalorder %s41, 1
        %s808 = scalar_select %p807, %s41, 1
        %s809 = scalar_lea.vmem %s14, %s808
        %p810 = pneg %p433
        %p811 = pneg %p430
        %p812 = scmp.lt.s32.totalorder %s41, 1
        %s813 = scalar_select %p812, %s41, 1
        %s814 = smul.addr %s813, 16
        %s815 = smul.addr %s814, 4
        %s816 = scalar_lea.vmem %s15, %s815
        %p817 = pneg %p459
        %p818 = pneg %p456
        %p819 = scmp.lt.s32.totalorder %s41, 1
        %s820 = scalar_select %p819, %s41, 1
        %s821 = scalar_lea.vmem %s16, %s820
        %p822 = pneg %p485
        %p823 = pneg %p482
        %p824 = pneg %p511
        %p825 = pneg %p508
        %s826 = smul.u32 2, %s40
        %p827 = scmp.lt.s32.totalorder %s41, 1
        %s828 = scalar_select %p827, %s41, 1
        %s829 = smul.addr %s828, 4
        %s830 = smul.addr %s829, 4
        %s831 = scalar_lea.vmem %s3, %s830
        %p832 = scmp.lt.s32.totalorder %s41, 1
        %s833 = scalar_select %p832, %s41, 1
        %s834 = scalar_lea.vmem %s4, %s833
        %p835 = scmp.lt.s32.totalorder %s41, 1
        %s836 = scalar_select %p835, %s41, 1
        %s837 = smul.addr %s836, 4
        %s838 = smul.addr %s837, 4
        %s839 = scalar_lea.vmem %s5, %s838
        %p840 = scmp.lt.s32.totalorder %s41, 1
        %s841 = scalar_select %p840, %s41, 1
        %s842 = scalar_lea.vmem %s6, %s841
        %p843 = scmp.lt.s32.totalorder %s41, 1
        %s844 = scalar_select %p843, %s41, 1
        %s845 = smul.addr %s844, 4
        %s846 = smul.addr %s845, 4
        %s847 = scalar_lea.vmem %s7, %s846
        %p848 = scmp.lt.s32.totalorder %s41, 1
        %s849 = scalar_select %p848, %s41, 1
        %s850 = scalar_lea.vmem %s8, %s849
        %p851 = scmp.lt.s32.totalorder %s41, 1
        %s852 = scalar_select %p851, %s41, 1
        %s853 = smul.addr %s852, 4
        %s854 = smul.addr %s853, 4
        %s855 = scalar_lea.vmem %s9, %s854
        %p856 = scmp.lt.s32.totalorder %s41, 1
        %s857 = scalar_select %p856, %s41, 1
        %s858 = scalar_lea.vmem %s10, %s857
        %p859 = scmp.lt.s32.totalorder %s41, 1
        %s860 = scalar_select %p859, %s41, 1
        %s861 = scalar_lea.vmem %s12, %s860
        %p862 = scmp.lt.s32.totalorder %s41, 1
        %s863 = scalar_select %p862, %s41, 1
        %s864 = smul.addr %s863, 4
        %s865 = smul.addr %s864, 4
        %s866 = scalar_lea.vmem %s13, %s865
        %p867 = scmp.lt.s32.totalorder %s41, 1
        %s868 = scalar_select %p867, %s41, 1
        %s869 = scalar_lea.vmem %s14, %s868
        %p870 = scmp.lt.s32.totalorder %s41, 1
        %s871 = scalar_select %p870, %s41, 1
        %s872 = smul.addr %s871, 16
        %s873 = smul.addr %s872, 4
        %s874 = scalar_lea.vmem %s15, %s873
        %p875 = scmp.lt.s32.totalorder %s41, 1
        %s876 = scalar_select %p875, %s41, 1
        %s877 = scalar_lea.vmem %s16, %s876
        %s878 = smul.u32 2, %s40
        %p880 = scmp.eq.s32.totalorder %s41, 0
        // Predicated region
        $region105: #{tpu_custom_call.1} parent=87 // pred_check
          %p881 = pneg %p880
        $region106: #{tpu_custom_call.1} parent=87 // pred_check_branch
          %883 = sbr.rel (%p881) target = $region108
        $region107: #{tpu_custom_call.1} parent=87 // pred_region
          %v884 = vld [vmem:[#allocation3] sm:$0xff]
          %v885 = vld [vmem:[#allocation3 + $0x8] sm:$0xff]
          %vm886 = vcmask 261120
          %887 = vst.msk [vmem:[#allocation2] sm:$0xff] %vm886, %v884
          %888 = vst.msk [vmem:[#allocation2 + $0x8] sm:$0xff] %vm886, %v885
        $region108: #{tpu_custom_call.1} parent=87 // pred_fallthru
          _
        %v889 = vld [vmem:[#allocation2] sm:$0xff]
        %v890 = vld [vmem:[#allocation2 + $0x8] sm:$0xff]
        %v891 = vld [vmem:[%s703] sm:$0x1]
        %v892 = vld [vmem:[%s712] sm:$0x1]
        %vm893 = vcmask 261120
        %v894 = vsel %vm893, %v889, 0.0
        %895 = vadd.xlane.f32.xlu0 %v894
        %v896 = vpop.xlane.xlu0 %895
        %v897 = vsel %vm893, %v890, 0.0
        %898 = vadd.xlane.f32.xlu0 %v897
        %v899 = vpop.xlane.xlu0 %898
        %v900 = vrcp.pop 32.0
        %v901 = vmul.f32 32.0, %v900
        %v902 = vsub.f32 1.0, %v901
        %v903 = vmul.f32 %v900, %v902
        %v904 = vadd.f32 %v900, %v903
        %vm905 = vweird.f32 %v900
        %v906 = vsel %vm905, %v900, %v904
        %v907 = vmul.f32 %v896, %v906
        %v908 = vmul.f32 %v899, %v906
        %v909 = vsub.f32 %v889, %v907
        %v910 = vsub.f32 %v890, %v908
        %v911 = vmul.f32 %v909, %v909
        %v912 = vmul.f32 %v910, %v910
        %v913 = vsel %vm893, %v911, 0.0
        %914 = vadd.xlane.f32.xlu0 %v913
        %v915 = vpop.xlane.xlu0 %914
        %v916 = vsel %vm893, %v912, 0.0
        %917 = vadd.xlane.f32.xlu0 %v916
        %v918 = vpop.xlane.xlu0 %917
        %v919 = vmul.f32 %v915, %v906
        %v920 = vmul.f32 %v918, %v906
        %v921 = vadd.f32 %v919, 1e-05
        %v922 = vadd.f32 %v920, 1e-05
        %v923 = vrsqrt.pop %v921
        %v924 = vmul.f32 %v923, %v921
        %v925 = vmul.f32 %v924, %v923
        %v926 = vmul.f32 0.5, %v925
        %v927 = vsub.f32 1.5, %v926
        %v928 = vmul.f32 %v923, %v927
        %vm929 = vweird.f32 %v921
        %vm930 = vweird.f32 %v923
        %vm931 = vmor %vm929, %vm930
        %v932 = vsel %vm931, %v923, %v928
        %v933 = vrsqrt.pop %v922
        %v934 = vmul.f32 %v933, %v922
        %v935 = vmul.f32 %v934, %v933
        %v936 = vmul.f32 0.5, %v935
        %v937 = vsub.f32 1.5, %v936
        %v938 = vmul.f32 %v933, %v937
        %vm939 = vweird.f32 %v922
        %vm940 = vweird.f32 %v933
        %vm941 = vmor %vm939, %vm940
        %v942 = vsel %vm941, %v933, %v938
        %v943 = vmul.f32 %v909, %v932
        %v944 = vmul.f32 %v910, %v942
        %v946 = vperm.slane %v891, 0
        %v948 = vmul.f32 %v943, %v946
        %v949 = vmul.f32 %v944, %v946
        %v951 = vperm.slane %v892, 0
        %v953 = vadd.f32 %v948, %v951
        %v954 = vadd.f32 %v949, %v951
        %v955 = vpack.c.bf16 %v954, %v953
        %v956 = vld [vmem:[%s831] sm:$0xf]
        %v957 = vld [vmem:[%s831 + $0x4] sm:$0xf]
        %v958 = vld [vmem:[%s831 + $0x8] sm:$0xf]
        %v959 = vld [vmem:[%s831 + $0xc] sm:$0xf]
        %v960 = vld [vmem:[%s834] sm:$0x1]
        %v962 = vperm.slane %v960, 0
        %v968 = vunpack.c.l.b16 %v956
        %v969 = vunpack.c.l.b16 %v957
        %v970 = vunpack.c.l.b16 %v958
        %v971 = vunpack.c.l.b16 %v959
        %v972 = vpack.c.b16 %v969, %v968
        %v973 = vpack.c.b16 %v971, %v970
        %v977 = vsel %vm893, %v955, 0
        %979 = vmatpush.bf16.msra.mxu0 0
        %980 = vmatpush.bf16.msra.mxu0 0
        %981 = vmatpush.bf16.msra.mxu0 0
        %982 = vmatpush.bf16.msra.mxu0 0
        %983 = vmatpush.bf16.msra.mxu0 0
        %984 = vmatpush.bf16.msra.mxu0 0
        %985 = vmatpush.bf16.msra.mxu0 %v973
        %986 = vmatpush.bf16.msra.mxu0 %v972
        %987 = vmatmul.bf16.gmra.mxu0 %v977
        %v988 = vpop.f32.mrf.mxu0
        %v989 = vadd.f32 %v962, %v988
        %v990 = vpop.f32.mrf.mxu0
        %v991 = vadd.f32 %v962, %v990
        %992 = vdwg.mxu0
        %v993 = vld [vmem:[%s839] sm:$0xf]
        %v994 = vld [vmem:[%s839 + $0x4] sm:$0xf]
        %v995 = vld [vmem:[%s839 + $0x8] sm:$0xf]
        %v996 = vld [vmem:[%s839 + $0xc] sm:$0xf]
        %v997 = vld [vmem:[%s842] sm:$0x1]
        %v999 = vperm.slane %v997, 0
        %v1005 = vunpack.c.l.b16 %v993
        %v1006 = vunpack.c.l.b16 %v994
        %v1007 = vunpack.c.l.b16 %v995
        %v1008 = vunpack.c.l.b16 %v996
        %v1009 = vpack.c.b16 %v1006, %v1005
        %v1010 = vpack.c.b16 %v1008, %v1007
        %1013 = vmatpush.bf16.msra.mxu0 0
        %1014 = vmatpush.bf16.msra.mxu0 0
        %1015 = vmatpush.bf16.msra.mxu0 0
        %1016 = vmatpush.bf16.msra.mxu0 0
        %1017 = vmatpush.bf16.msra.mxu0 0
        %1018 = vmatpush.bf16.msra.mxu0 0
        %1019 = vmatpush.bf16.msra.mxu0 %v1010
        %1020 = vmatpush.bf16.msra.mxu0 %v1009
        %1021 = vmatmul.bf16.gmra.mxu0 %v977
        %v1022 = vpop.f32.mrf.mxu0
        %v1023 = vadd.f32 %v999, %v1022
        %v1024 = vpop.f32.mrf.mxu0
        %v1025 = vadd.f32 %v999, %v1024
        %1026 = vdwg.mxu0
        %v1027 = vld [vmem:[%s847] sm:$0xf]
        %v1028 = vld [vmem:[%s847 + $0x4] sm:$0xf]
        %v1029 = vld [vmem:[%s847 + $0x8] sm:$0xf]
        %v1030 = vld [vmem:[%s847 + $0xc] sm:$0xf]
        %v1031 = vld [vmem:[%s850] sm:$0x1]
        %v1033 = vperm.slane %v1031, 0
        %v1039 = vunpack.c.l.b16 %v1027
        %v1040 = vunpack.c.l.b16 %v1028
        %v1041 = vunpack.c.l.b16 %v1029
        %v1042 = vunpack.c.l.b16 %v1030
        %v1043 = vpack.c.b16 %v1040, %v1039
        %v1044 = vpack.c.b16 %v1042, %v1041
        %1047 = vmatpush.bf16.msra.mxu0 0
        %1048 = vmatpush.bf16.msra.mxu0 0
        %1049 = vmatpush.bf16.msra.mxu0 0
        %1050 = vmatpush.bf16.msra.mxu0 0
        %1051 = vmatpush.bf16.msra.mxu0 0
        %1052 = vmatpush.bf16.msra.mxu0 0
        %1053 = vmatpush.bf16.msra.mxu0 %v1044
        %1054 = vmatpush.bf16.msra.mxu0 %v1043
        %1055 = vmatmul.bf16.gmra.mxu0 %v977
        %v1056 = vpop.f32.mrf.mxu0
        %v1057 = vadd.f32 %v1033, %v1056
        %v1058 = vpop.f32.mrf.mxu0
        %v1059 = vadd.f32 %v1033, %v1058
        %1060 = vdwg.mxu0
        %v1061 = vmul.f32 %v989, 0.35355338
        %v1062 = vmul.f32 %v991, 0.35355338
        %v1063 = vpack.c.bf16 %v1061, %v1061
        %v1064 = vpack.c.bf16 %v1062, %v1062
        %v1065 = vpack.c.bf16 %v1023, %v1023
        %v1066 = vpack.c.bf16 %v1025, %v1025
        %v1067 = vpack.c.bf16 %v1057, %v1057
        %v1068 = vpack.c.bf16 %v1059, %v1059
        %v1069 = vlaneseq
        %v1070 = vshrl.u32 %v1069, 7
        %v1071 = vlaneseq
        %v1072 = vand.u32 %v1071, 127
        %vm1073 = vcmp.le.s32.totalorder %v1072, %v1070
        %v1074 = vsel %vm1073, 0.0, -1e+30
        %v1075 = vld [vmem:[%s855] sm:$0xf]
        %v1076 = vld [vmem:[%s855 + $0x4] sm:$0xf]
        %v1077 = vld [vmem:[%s855 + $0x8] sm:$0xf]
        %v1078 = vld [vmem:[%s855 + $0xc] sm:$0xf]
        %vm1079 = vcmask 64512
        %v1081 = vsel %vm1079, %v1063, 0
        %v1084 = vsel %vm1079, %v1065, 0
        %1086 = vmatpush.bf16.xpose.msra.mxu0 0
        %1087 = vmatpush.bf16.xpose.msra.mxu0 0
        %1088 = vmatpush.bf16.xpose.msra.mxu0 0
        %1089 = vmatpush.bf16.xpose.msra.mxu0 0
        %1090 = vmatpush.bf16.xpose.msra.mxu0 0
        %1091 = vmatpush.bf16.xpose.msra.mxu0 0
        %1092 = vmatpush.bf16.xpose.msra.mxu0 0
        %1093 = vmatpush.bf16.xpose.msra.mxu0 %v1084
        %1094 = vmatmul.bf16.gmra.mxu0 %v1081
        %v1095 = vpop.f32.mrf.mxu0
        %v1096 = vadd.f32 %v1074, %v1095
        %v1097 = vpop.f32.mrf.mxu0
        %1098 = vdwg.mxu0
        %v1100 = vsel %vm1079, %v1064, 0
        %v1103 = vsel %vm1079, %v1066, 0
        %1105 = vmatpush.bf16.xpose.msra.mxu0 0
        %1106 = vmatpush.bf16.xpose.msra.mxu0 0
        %1107 = vmatpush.bf16.xpose.msra.mxu0 0
        %1108 = vmatpush.bf16.xpose.msra.mxu0 0
        %1109 = vmatpush.bf16.xpose.msra.mxu0 0
        %1110 = vmatpush.bf16.xpose.msra.mxu0 0
        %1111 = vmatpush.bf16.xpose.msra.mxu0 0
        %1112 = vmatpush.bf16.xpose.msra.mxu0 %v1103
        %1113 = vmatmul.bf16.gmra.mxu0 %v1100
        %v1114 = vpop.f32.mrf.mxu0
        %v1115 = vadd.f32 %v1074, %v1114
        %v1116 = vpop.f32.mrf.mxu0
        %1117 = vdwg.mxu0
        %v1118 = vsel %vm1079, %v1096, -inf
        %1119 = vmax.xlane.f32.xlu0 %v1118
        %v1120 = vpop.xlane.xlu0 %1119
        %v1121 = vsel %vm1079, %v1115, -inf
        %1122 = vmax.xlane.f32.xlu0 %v1121
        %v1123 = vpop.xlane.xlu0 %1122
        %v1124 = vsub.f32 %v1096, %v1120
        %v1125 = vsub.f32 %v1115, %v1123
        %v1126 = vmul.f32 %v1124, 1.442695
        %v1127 = vpow.pop %v1126
        %v1128 = vmul.f32 %v1125, 1.442695
        %v1129 = vpow.pop %v1128
        %v1130 = vsel %vm1079, %v1127, 0.0
        %1131 = vadd.xlane.f32.xlu0 %v1130
        %v1132 = vpop.xlane.xlu0 %1131
        %v1133 = vsel %vm1079, %v1129, 0.0
        %1134 = vadd.xlane.f32.xlu0 %v1133
        %v1135 = vpop.xlane.xlu0 %1134
        %v1136 = vrcp.pop %v1132
        %v1137 = vmul.f32 %v1132, %v1136
        %v1138 = vsub.f32 1.0, %v1137
        %v1139 = vmul.f32 %v1136, %v1138
        %v1140 = vadd.f32 %v1136, %v1139
        %vm1141 = vweird.f32 %v1132
        %vm1142 = vweird.f32 %v1136
        %vm1143 = vmor %vm1141, %vm1142
        %v1144 = vsel %vm1143, %v1136, %v1140
        %v1145 = vand.u32 2147483647, %v1132
        %vm1146 = vcmp.eq.f32.partialorder %v1145, 8.507059e+37
        %v1147 = vand.u32 %v1132, 2147483648
        %v1148 = vor.u32 1.1754944e-38, %v1147
        %v1149 = vsel %vm1146, %v1148, %v1144
        %v1150 = vmul.f32 %v1127, %v1149
        %v1151 = vrcp.pop %v1135
        %v1152 = vmul.f32 %v1135, %v1151
        %v1153 = vsub.f32 1.0, %v1152
        %v1154 = vmul.f32 %v1151, %v1153
        %v1155 = vadd.f32 %v1151, %v1154
        %vm1156 = vweird.f32 %v1135
        %vm1157 = vweird.f32 %v1151
        %vm1158 = vmor %vm1156, %vm1157
        %v1159 = vsel %vm1158, %v1151, %v1155
        %v1160 = vand.u32 2147483647, %v1135
        %vm1161 = vcmp.eq.f32.partialorder %v1160, 8.507059e+37
        %v1162 = vand.u32 %v1135, 2147483648
        %v1163 = vor.u32 1.1754944e-38, %v1162
        %v1164 = vsel %vm1161, %v1163, %v1159
        %v1165 = vmul.f32 %v1129, %v1164
        %v1166 = vpack.c.bf16 %v1150, %v1150
        %v1167 = vpack.c.bf16 %v1165, %v1165
        %v1169 = vsel %vm1079, %v1166, 0
        %vm1171 = vcmask 1043456
        %v1173 = vsel %vm1171, %v1067, 0
        %1175 = vmatpush.bf16.msra.mxu0 0
        %1176 = vmatpush.bf16.msra.mxu0 0
        %1177 = vmatpush.bf16.msra.mxu0 0
        %1178 = vmatpush.bf16.msra.mxu0 0
        %1179 = vmatpush.bf16.msra.mxu0 0
        %1180 = vmatpush.bf16.msra.mxu0 0
        %1181 = vmatpush.bf16.msra.mxu0 0
        %1182 = vmatpush.bf16.msra.mxu0 %v1173
        %1183 = vmatmul.bf16.gmra.mxu0 %v1169
        %v1184 = vpop.f32.mrf.mxu0
        %v1185 = vadd.f32 0.0, %v1184
        %v1186 = vpop.f32.mrf.mxu0
        %1187 = vdwg.mxu0
        %v1189 = vsel %vm1079, %v1167, 0
        %v1192 = vsel %vm1171, %v1068, 0
        %1194 = vmatpush.bf16.msra.mxu0 0
        %1195 = vmatpush.bf16.msra.mxu0 0
        %1196 = vmatpush.bf16.msra.mxu0 0
        %1197 = vmatpush.bf16.msra.mxu0 0
        %1198 = vmatpush.bf16.msra.mxu0 0
        %1199 = vmatpush.bf16.msra.mxu0 0
        %1200 = vmatpush.bf16.msra.mxu0 0
        %1201 = vmatpush.bf16.msra.mxu0 %v1192
        %1202 = vmatmul.bf16.gmra.mxu0 %v1189
        %v1203 = vpop.f32.mrf.mxu0
        %v1204 = vadd.f32 0.0, %v1203
        %v1205 = vpop.f32.mrf.mxu0
        %1206 = vdwg.mxu0
        %v1207 = vpack.c.bf16 %v1204, %v1185
        %v1209 = vunpack.c.l.b16 %v1063
        %v1210 = vpack.c.b16 %v1209, %v1209
        %1211 = vrot.lane.b32.xlu0 %v1210, 120
        %v1212 = vpop.permute.xlu0 %1211
        %v1214 = vunpack.c.l.b16 %v1065
        %v1215 = vpack.c.b16 %v1214, %v1214
        %1216 = vrot.lane.b32.xlu0 %v1215, 120
        %v1217 = vpop.permute.xlu0 %1216
        %v1219 = vsel %vm1079, %v1212, 0
        %v1222 = vsel %vm1079, %v1217, 0
        %1224 = vmatpush.bf16.xpose.msra.mxu0 0
        %1225 = vmatpush.bf16.xpose.msra.mxu0 0
        %1226 = vmatpush.bf16.xpose.msra.mxu0 0
        %1227 = vmatpush.bf16.xpose.msra.mxu0 0
        %1228 = vmatpush.bf16.xpose.msra.mxu0 0
        %1229 = vmatpush.bf16.xpose.msra.mxu0 0
        %1230 = vmatpush.bf16.xpose.msra.mxu0 0
        %1231 = vmatpush.bf16.xpose.msra.mxu0 %v1222
        %1232 = vmatmul.bf16.gmra.mxu0 %v1219
        %v1233 = vpop.f32.mrf.mxu0
        %v1234 = vadd.f32 %v1074, %v1233
        %v1235 = vpop.f32.mrf.mxu0
        %1236 = vdwg.mxu0
        %v1238 = vunpack.c.l.b16 %v1064
        %v1239 = vpack.c.b16 %v1238, %v1238
        %1240 = vrot.lane.b32.xlu0 %v1239, 120
        %v1241 = vpop.permute.xlu0 %1240
        %v1243 = vunpack.c.l.b16 %v1066
        %v1244 = vpack.c.b16 %v1243, %v1243
        %1245 = vrot.lane.b32.xlu0 %v1244, 120
        %v1246 = vpop.permute.xlu0 %1245
        %v1248 = vsel %vm1079, %v1241, 0
        %v1251 = vsel %vm1079, %v1246, 0
        %1253 = vmatpush.bf16.xpose.msra.mxu0 0
        %1254 = vmatpush.bf16.xpose.msra.mxu0 0
        %1255 = vmatpush.bf16.xpose.msra.mxu0 0
        %1256 = vmatpush.bf16.xpose.msra.mxu0 0
        %1257 = vmatpush.bf16.xpose.msra.mxu0 0
        %1258 = vmatpush.bf16.xpose.msra.mxu0 0
        %1259 = vmatpush.bf16.xpose.msra.mxu0 0
        %1260 = vmatpush.bf16.xpose.msra.mxu0 %v1251
        %1261 = vmatmul.bf16.gmra.mxu0 %v1248
        %v1262 = vpop.f32.mrf.mxu0
        %v1263 = vadd.f32 %v1074, %v1262
        %v1264 = vpop.f32.mrf.mxu0
        %1265 = vdwg.mxu0
        %v1266 = vsel %vm1079, %v1234, -inf
        %1267 = vmax.xlane.f32.xlu0 %v1266
        %v1268 = vpop.xlane.xlu0 %1267
        %v1269 = vsel %vm1079, %v1263, -inf
        %1270 = vmax.xlane.f32.xlu0 %v1269
        %v1271 = vpop.xlane.xlu0 %1270
        %v1272 = vsub.f32 %v1234, %v1268
        %v1273 = vsub.f32 %v1263, %v1271
        %v1274 = vmul.f32 %v1272, 1.442695
        %v1275 = vpow.pop %v1274
        %v1276 = vmul.f32 %v1273, 1.442695
        %v1277 = vpow.pop %v1276
        %v1278 = vsel %vm1079, %v1275, 0.0
        %1279 = vadd.xlane.f32.xlu0 %v1278
        %v1280 = vpop.xlane.xlu0 %1279
        %v1281 = vsel %vm1079, %v1277, 0.0
        %1282 = vadd.xlane.f32.xlu0 %v1281
        %v1283 = vpop.xlane.xlu0 %1282
        %v1284 = vrcp.pop %v1280
        %v1285 = vmul.f32 %v1280, %v1284
        %v1286 = vsub.f32 1.0, %v1285
        %v1287 = vmul.f32 %v1284, %v1286
        %v1288 = vadd.f32 %v1284, %v1287
        %vm1289 = vweird.f32 %v1280
        %vm1290 = vweird.f32 %v1284
        %vm1291 = vmor %vm1289, %vm1290
        %v1292 = vsel %vm1291, %v1284, %v1288
        %v1293 = vand.u32 2147483647, %v1280
        %vm1294 = vcmp.eq.f32.partialorder %v1293, 8.507059e+37
        %v1295 = vand.u32 %v1280, 2147483648
        %v1296 = vor.u32 1.1754944e-38, %v1295
        %v1297 = vsel %vm1294, %v1296, %v1292
        %v1298 = vmul.f32 %v1275, %v1297
        %v1299 = vrcp.pop %v1283
        %v1300 = vmul.f32 %v1283, %v1299
        %v1301 = vsub.f32 1.0, %v1300
        %v1302 = vmul.f32 %v1299, %v1301
        %v1303 = vadd.f32 %v1299, %v1302
        %vm1304 = vweird.f32 %v1283
        %vm1305 = vweird.f32 %v1299
        %vm1306 = vmor %vm1304, %vm1305
        %v1307 = vsel %vm1306, %v1299, %v1303
        %v1308 = vand.u32 2147483647, %v1283
        %vm1309 = vcmp.eq.f32.partialorder %v1308, 8.507059e+37
        %v1310 = vand.u32 %v1283, 2147483648
        %v1311 = vor.u32 1.1754944e-38, %v1310
        %v1312 = vsel %vm1309, %v1311, %v1307
        %v1313 = vmul.f32 %v1277, %v1312
        %v1314 = vpack.c.bf16 %v1298, %v1298
        %v1315 = vpack.c.bf16 %v1313, %v1313
        %v1317 = vunpack.c.l.b16 %v1067
        %v1318 = vpack.c.b16 %v1317, %v1317
        %1319 = vrot.lane.b32.xlu0 %v1318, 120
        %v1320 = vpop.permute.xlu0 %1319
        %v1322 = vsel %vm1079, %v1314, 0
        %v1325 = vsel %vm1171, %v1320, 0
        %1327 = vmatpush.bf16.msra.mxu0 0
        %1328 = vmatpush.bf16.msra.mxu0 0
        %1329 = vmatpush.bf16.msra.mxu0 0
        %1330 = vmatpush.bf16.msra.mxu0 0
        %1331 = vmatpush.bf16.msra.mxu0 0
        %1332 = vmatpush.bf16.msra.mxu0 0
        %1333 = vmatpush.bf16.msra.mxu0 0
        %1334 = vmatpush.bf16.msra.mxu0 %v1325
        %1335 = vmatmul.bf16.gmra.mxu0 %v1322
        %v1336 = vpop.f32.mrf.mxu0
        %v1337 = vadd.f32 0.0, %v1336
        %v1338 = vpop.f32.mrf.mxu0
        %1339 = vdwg.mxu0
        %v1341 = vunpack.c.l.b16 %v1068
        %v1342 = vpack.c.b16 %v1341, %v1341
        %1343 = vrot.lane.b32.xlu0 %v1342, 120
        %v1344 = vpop.permute.xlu0 %1343
        %v1346 = vsel %vm1079, %v1315, 0
        %v1349 = vsel %vm1171, %v1344, 0
        %1351 = vmatpush.bf16.msra.mxu0 0
        %1352 = vmatpush.bf16.msra.mxu0 0
        %1353 = vmatpush.bf16.msra.mxu0 0
        %1354 = vmatpush.bf16.msra.mxu0 0
        %1355 = vmatpush.bf16.msra.mxu0 0
        %1356 = vmatpush.bf16.msra.mxu0 0
        %1357 = vmatpush.bf16.msra.mxu0 0
        %1358 = vmatpush.bf16.msra.mxu0 %v1349
        %1359 = vmatmul.bf16.gmra.mxu0 %v1346
        %v1360 = vpop.f32.mrf.mxu0
        %v1361 = vadd.f32 0.0, %v1360
        %v1362 = vpop.f32.mrf.mxu0
        %1363 = vdwg.mxu0
        %v1364 = vpack.c.bf16 %v1361, %v1337
        %v1366 = vsel %vm1079, %v1364, 0
        %v1369 = vsel %vm1171, %v1076, 0
        %1371 = vmatpush.bf16.msra.mxu0 0
        %1372 = vmatpush.bf16.msra.mxu0 0
        %1373 = vmatpush.bf16.msra.mxu0 0
        %1374 = vmatpush.bf16.msra.mxu0 0
        %1375 = vmatpush.bf16.msra.mxu0 0
        %1376 = vmatpush.bf16.msra.mxu0 0
        %1377 = vmatpush.bf16.msra.mxu0 0
        %1378 = vmatpush.bf16.msra.mxu0 %v1369
        %1379 = vmatmul.bf16.gmra.mxu0 %v1366
        %v1380 = vpop.f32.mrf.mxu0
        %v1381 = vadd.f32 0.0, %v1380
        %v1382 = vpop.f32.mrf.mxu0
        %v1383 = vadd.f32 0.0, %v1382
        %1384 = vdwg.mxu0
        %v1386 = vsel %vm1079, %v1207, 0
        %v1389 = vsel %vm1171, %v1075, 0
        %1391 = vmatpush.bf16.msra.mxu0 0
        %1392 = vmatpush.bf16.msra.mxu0 0
        %1393 = vmatpush.bf16.msra.mxu0 0
        %1394 = vmatpush.bf16.msra.mxu0 0
        %1395 = vmatpush.bf16.msra.mxu0 0
        %1396 = vmatpush.bf16.msra.mxu0 0
        %1397 = vmatpush.bf16.msra.mxu0 0
        %1398 = vmatpush.bf16.msra.mxu0 %v1389
        %1399 = vmatmul.bf16.gmra.mxu0 %v1386
        %v1400 = vpop.f32.mrf.mxu0
        %v1401 = vadd.f32 %v1381, %v1400
        %v1402 = vpop.f32.mrf.mxu0
        %v1403 = vadd.f32 %v1383, %v1402
        %1404 = vdwg.mxu0
        %1405 = vrot.lane.b32.xlu0 %v1210, 112
        %v1406 = vpop.permute.xlu0 %1405
        %1407 = vrot.lane.b32.xlu0 %v1215, 112
        %v1408 = vpop.permute.xlu0 %1407
        %v1410 = vsel %vm1079, %v1406, 0
        %v1413 = vsel %vm1079, %v1408, 0
        %1415 = vmatpush.bf16.xpose.msra.mxu0 0
        %1416 = vmatpush.bf16.xpose.msra.mxu0 0
        %1417 = vmatpush.bf16.xpose.msra.mxu0 0
        %1418 = vmatpush.bf16.xpose.msra.mxu0 0
        %1419 = vmatpush.bf16.xpose.msra.mxu0 0
        %1420 = vmatpush.bf16.xpose.msra.mxu0 0
        %1421 = vmatpush.bf16.xpose.msra.mxu0 0
        %1422 = vmatpush.bf16.xpose.msra.mxu0 %v1413
        %1423 = vmatmul.bf16.gmra.mxu0 %v1410
        %v1424 = vpop.f32.mrf.mxu0
        %v1425 = vadd.f32 %v1074, %v1424
        %v1426 = vpop.f32.mrf.mxu0
        %1427 = vdwg.mxu0
        %1428 = vrot.lane.b32.xlu0 %v1239, 112
        %v1429 = vpop.permute.xlu0 %1428
        %1430 = vrot.lane.b32.xlu0 %v1244, 112
        %v1431 = vpop.permute.xlu0 %1430
        %v1433 = vsel %vm1079, %v1429, 0
        %v1436 = vsel %vm1079, %v1431, 0
        %1438 = vmatpush.bf16.xpose.msra.mxu0 0
        %1439 = vmatpush.bf16.xpose.msra.mxu0 0
        %1440 = vmatpush.bf16.xpose.msra.mxu0 0
        %1441 = vmatpush.bf16.xpose.msra.mxu0 0
        %1442 = vmatpush.bf16.xpose.msra.mxu0 0
        %1443 = vmatpush.bf16.xpose.msra.mxu0 0
        %1444 = vmatpush.bf16.xpose.msra.mxu0 0
        %1445 = vmatpush.bf16.xpose.msra.mxu0 %v1436
        %1446 = vmatmul.bf16.gmra.mxu0 %v1433
        %v1447 = vpop.f32.mrf.mxu0
        %v1448 = vadd.f32 %v1074, %v1447
        %v1449 = vpop.f32.mrf.mxu0
        %1450 = vdwg.mxu0
        %v1451 = vsel %vm1079, %v1425, -inf
        %1452 = vmax.xlane.f32.xlu0 %v1451
        %v1453 = vpop.xlane.xlu0 %1452
        %v1454 = vsel %vm1079, %v1448, -inf
        %1455 = vmax.xlane.f32.xlu0 %v1454
        %v1456 = vpop.xlane.xlu0 %1455
        %v1457 = vsub.f32 %v1425, %v1453
        %v1458 = vsub.f32 %v1448, %v1456
        %v1459 = vmul.f32 %v1457, 1.442695
        %v1460 = vpow.pop %v1459
        %v1461 = vmul.f32 %v1458, 1.442695
        %v1462 = vpow.pop %v1461
        %v1463 = vsel %vm1079, %v1460, 0.0
        %1464 = vadd.xlane.f32.xlu0 %v1463
        %v1465 = vpop.xlane.xlu0 %1464
        %v1466 = vsel %vm1079, %v1462, 0.0
        %1467 = vadd.xlane.f32.xlu0 %v1466
        %v1468 = vpop.xlane.xlu0 %1467
        %v1469 = vrcp.pop %v1465
        %v1470 = vmul.f32 %v1465, %v1469
        %v1471 = vsub.f32 1.0, %v1470
        %v1472 = vmul.f32 %v1469, %v1471
        %v1473 = vadd.f32 %v1469, %v1472
        %vm1474 = vweird.f32 %v1465
        %vm1475 = vweird.f32 %v1469
        %vm1476 = vmor %vm1474, %vm1475
        %v1477 = vsel %vm1476, %v1469, %v1473
        %v1478 = vand.u32 2147483647, %v1465
        %vm1479 = vcmp.eq.f32.partialorder %v1478, 8.507059e+37
        %v1480 = vand.u32 %v1465, 2147483648
        %v1481 = vor.u32 1.1754944e-38, %v1480
        %v1482 = vsel %vm1479, %v1481, %v1477
        %v1483 = vmul.f32 %v1460, %v1482
        %v1484 = vrcp.pop %v1468
        %v1485 = vmul.f32 %v1468, %v1484
        %v1486 = vsub.f32 1.0, %v1485
        %v1487 = vmul.f32 %v1484, %v1486
        %v1488 = vadd.f32 %v1484, %v1487
        %vm1489 = vweird.f32 %v1468
        %vm1490 = vweird.f32 %v1484
        %vm1491 = vmor %vm1489, %vm1490
        %v1492 = vsel %vm1491, %v1484, %v1488
        %v1493 = vand.u32 2147483647, %v1468
        %vm1494 = vcmp.eq.f32.partialorder %v1493, 8.507059e+37
        %v1495 = vand.u32 %v1468, 2147483648
        %v1496 = vor.u32 1.1754944e-38, %v1495
        %v1497 = vsel %vm1494, %v1496, %v1492
        %v1498 = vmul.f32 %v1462, %v1497
        %v1499 = vpack.c.bf16 %v1483, %v1483
        %v1500 = vpack.c.bf16 %v1498, %v1498
        %1501 = vrot.lane.b32.xlu0 %v1318, 112
        %v1502 = vpop.permute.xlu0 %1501
        %v1504 = vsel %vm1079, %v1499, 0
        %v1507 = vsel %vm1171, %v1502, 0
        %1509 = vmatpush.bf16.msra.mxu0 0
        %1510 = vmatpush.bf16.msra.mxu0 0
        %1511 = vmatpush.bf16.msra.mxu0 0
        %1512 = vmatpush.bf16.msra.mxu0 0
        %1513 = vmatpush.bf16.msra.mxu0 0
        %1514 = vmatpush.bf16.msra.mxu0 0
        %1515 = vmatpush.bf16.msra.mxu0 0
        %1516 = vmatpush.bf16.msra.mxu0 %v1507
        %1517 = vmatmul.bf16.gmra.mxu0 %v1504
        %v1518 = vpop.f32.mrf.mxu0
        %v1519 = vadd.f32 0.0, %v1518
        %v1520 = vpop.f32.mrf.mxu0
        %1521 = vdwg.mxu0
        %1522 = vrot.lane.b32.xlu0 %v1342, 112
        %v1523 = vpop.permute.xlu0 %1522
        %v1525 = vsel %vm1079, %v1500, 0
        %v1528 = vsel %vm1171, %v1523, 0
        %1530 = vmatpush.bf16.msra.mxu0 0
        %1531 = vmatpush.bf16.msra.mxu0 0
        %1532 = vmatpush.bf16.msra.mxu0 0
        %1533 = vmatpush.bf16.msra.mxu0 0
        %1534 = vmatpush.bf16.msra.mxu0 0
        %1535 = vmatpush.bf16.msra.mxu0 0
        %1536 = vmatpush.bf16.msra.mxu0 0
        %1537 = vmatpush.bf16.msra.mxu0 %v1528
        %1538 = vmatmul.bf16.gmra.mxu0 %v1525
        %v1539 = vpop.f32.mrf.mxu0
        %v1540 = vadd.f32 0.0, %v1539
        %v1541 = vpop.f32.mrf.mxu0
        %1542 = vdwg.mxu0
        %v1543 = vpack.c.bf16 %v1540, %v1519
        %v1545 = vsel %vm1079, %v1543, 0
        %v1548 = vsel %vm1171, %v1077, 0
        %1550 = vmatpush.bf16.msra.mxu0 0
        %1551 = vmatpush.bf16.msra.mxu0 0
        %1552 = vmatpush.bf16.msra.mxu0 0
        %1553 = vmatpush.bf16.msra.mxu0 0
        %1554 = vmatpush.bf16.msra.mxu0 0
        %1555 = vmatpush.bf16.msra.mxu0 0
        %1556 = vmatpush.bf16.msra.mxu0 0
        %1557 = vmatpush.bf16.msra.mxu0 %v1548
        %1558 = vmatmul.bf16.gmra.mxu0 %v1545
        %v1559 = vpop.f32.mrf.mxu0
        %v1560 = vadd.f32 0.0, %v1559
        %v1561 = vpop.f32.mrf.mxu0
        %v1562 = vadd.f32 0.0, %v1561
        %1563 = vdwg.mxu0
        %v1564 = vadd.f32 %v1401, %v1560
        %v1565 = vadd.f32 %v1403, %v1562
        %1566 = vrot.lane.b32.xlu0 %v1210, 104
        %v1567 = vpop.permute.xlu0 %1566
        %1568 = vrot.lane.b32.xlu0 %v1215, 104
        %v1569 = vpop.permute.xlu0 %1568
        %v1571 = vsel %vm1079, %v1567, 0
        %v1574 = vsel %vm1079, %v1569, 0
        %1576 = vmatpush.bf16.xpose.msra.mxu0 0
        %1577 = vmatpush.bf16.xpose.msra.mxu0 0
        %1578 = vmatpush.bf16.xpose.msra.mxu0 0
        %1579 = vmatpush.bf16.xpose.msra.mxu0 0
        %1580 = vmatpush.bf16.xpose.msra.mxu0 0
        %1581 = vmatpush.bf16.xpose.msra.mxu0 0
        %1582 = vmatpush.bf16.xpose.msra.mxu0 0
        %1583 = vmatpush.bf16.xpose.msra.mxu0 %v1574
        %1584 = vmatmul.bf16.gmra.mxu0 %v1571
        %v1585 = vpop.f32.mrf.mxu0
        %v1586 = vadd.f32 %v1074, %v1585
        %v1587 = vpop.f32.mrf.mxu0
        %1588 = vdwg.mxu0
        %1589 = vrot.lane.b32.xlu0 %v1239, 104
        %v1590 = vpop.permute.xlu0 %1589
        %1591 = vrot.lane.b32.xlu0 %v1244, 104
        %v1592 = vpop.permute.xlu0 %1591
        %v1594 = vsel %vm1079, %v1590, 0
        %v1597 = vsel %vm1079, %v1592, 0
        %1599 = vmatpush.bf16.xpose.msra.mxu0 0
        %1600 = vmatpush.bf16.xpose.msra.mxu0 0
        %1601 = vmatpush.bf16.xpose.msra.mxu0 0
        %1602 = vmatpush.bf16.xpose.msra.mxu0 0
        %1603 = vmatpush.bf16.xpose.msra.mxu0 0
        %1604 = vmatpush.bf16.xpose.msra.mxu0 0
        %1605 = vmatpush.bf16.xpose.msra.mxu0 0
        %1606 = vmatpush.bf16.xpose.msra.mxu0 %v1597
        %1607 = vmatmul.bf16.gmra.mxu0 %v1594
        %v1608 = vpop.f32.mrf.mxu0
        %v1609 = vadd.f32 %v1074, %v1608
        %v1610 = vpop.f32.mrf.mxu0
        %1611 = vdwg.mxu0
        %v1612 = vsel %vm1079, %v1586, -inf
        %1613 = vmax.xlane.f32.xlu0 %v1612
        %v1614 = vpop.xlane.xlu0 %1613
        %v1615 = vsel %vm1079, %v1609, -inf
        %1616 = vmax.xlane.f32.xlu0 %v1615
        %v1617 = vpop.xlane.xlu0 %1616
        %v1618 = vsub.f32 %v1586, %v1614
        %v1619 = vsub.f32 %v1609, %v1617
        %v1620 = vmul.f32 %v1618, 1.442695
        %v1621 = vpow.pop %v1620
        %v1622 = vmul.f32 %v1619, 1.442695
        %v1623 = vpow.pop %v1622
        %v1624 = vsel %vm1079, %v1621, 0.0
        %1625 = vadd.xlane.f32.xlu0 %v1624
        %v1626 = vpop.xlane.xlu0 %1625
        %v1627 = vsel %vm1079, %v1623, 0.0
        %1628 = vadd.xlane.f32.xlu0 %v1627
        %v1629 = vpop.xlane.xlu0 %1628
        %v1630 = vrcp.pop %v1626
        %v1631 = vmul.f32 %v1626, %v1630
        %v1632 = vsub.f32 1.0, %v1631
        %v1633 = vmul.f32 %v1630, %v1632
        %v1634 = vadd.f32 %v1630, %v1633
        %vm1635 = vweird.f32 %v1626
        %vm1636 = vweird.f32 %v1630
        %vm1637 = vmor %vm1635, %vm1636
        %v1638 = vsel %vm1637, %v1630, %v1634
        %v1639 = vand.u32 2147483647, %v1626
        %vm1640 = vcmp.eq.f32.partialorder %v1639, 8.507059e+37
        %v1641 = vand.u32 %v1626, 2147483648
        %v1642 = vor.u32 1.1754944e-38, %v1641
        %v1643 = vsel %vm1640, %v1642, %v1638
        %v1644 = vmul.f32 %v1621, %v1643
        %v1645 = vrcp.pop %v1629
        %v1646 = vmul.f32 %v1629, %v1645
        %v1647 = vsub.f32 1.0, %v1646
        %v1648 = vmul.f32 %v1645, %v1647
        %v1649 = vadd.f32 %v1645, %v1648
        %vm1650 = vweird.f32 %v1629
        %vm1651 = vweird.f32 %v1645
        %vm1652 = vmor %vm1650, %vm1651
        %v1653 = vsel %vm1652, %v1645, %v1649
        %v1654 = vand.u32 2147483647, %v1629
        %vm1655 = vcmp.eq.f32.partialorder %v1654, 8.507059e+37
        %v1656 = vand.u32 %v1629, 2147483648
        %v1657 = vor.u32 1.1754944e-38, %v1656
        %v1658 = vsel %vm1655, %v1657, %v1653
        %v1659 = vmul.f32 %v1623, %v1658
        %v1660 = vpack.c.bf16 %v1644, %v1644
        %v1661 = vpack.c.bf16 %v1659, %v1659
        %1662 = vrot.lane.b32.xlu0 %v1318, 104
        %v1663 = vpop.permute.xlu0 %1662
        %v1665 = vsel %vm1079, %v1660, 0
        %v1668 = vsel %vm1171, %v1663, 0
        %1670 = vmatpush.bf16.msra.mxu0 0
        %1671 = vmatpush.bf16.msra.mxu0 0
        %1672 = vmatpush.bf16.msra.mxu0 0
        %1673 = vmatpush.bf16.msra.mxu0 0
        %1674 = vmatpush.bf16.msra.mxu0 0
        %1675 = vmatpush.bf16.msra.mxu0 0
        %1676 = vmatpush.bf16.msra.mxu0 0
        %1677 = vmatpush.bf16.msra.mxu0 %v1668
        %1678 = vmatmul.bf16.gmra.mxu0 %v1665
        %v1679 = vpop.f32.mrf.mxu0
        %v1680 = vadd.f32 0.0, %v1679
        %v1681 = vpop.f32.mrf.mxu0
        %1682 = vdwg.mxu0
        %1683 = vrot.lane.b32.xlu0 %v1342, 104
        %v1684 = vpop.permute.xlu0 %1683
        %v1686 = vsel %vm1079, %v1661, 0
        %v1689 = vsel %vm1171, %v1684, 0
        %1691 = vmatpush.bf16.msra.mxu0 0
        %1692 = vmatpush.bf16.msra.mxu0 0
        %1693 = vmatpush.bf16.msra.mxu0 0
        %1694 = vmatpush.bf16.msra.mxu0 0
        %1695 = vmatpush.bf16.msra.mxu0 0
        %1696 = vmatpush.bf16.msra.mxu0 0
        %1697 = vmatpush.bf16.msra.mxu0 0
        %1698 = vmatpush.bf16.msra.mxu0 %v1689
        %1699 = vmatmul.bf16.gmra.mxu0 %v1686
        %v1700 = vpop.f32.mrf.mxu0
        %v1701 = vadd.f32 0.0, %v1700
        %v1702 = vpop.f32.mrf.mxu0
        %1703 = vdwg.mxu0
        %v1704 = vpack.c.bf16 %v1701, %v1680
        %v1706 = vsel %vm1079, %v1704, 0
        %v1709 = vsel %vm1171, %v1078, 0
        %1711 = vmatpush.bf16.msra.mxu0 0
        %1712 = vmatpush.bf16.msra.mxu0 0
        %1713 = vmatpush.bf16.msra.mxu0 0
        %1714 = vmatpush.bf16.msra.mxu0 0
        %1715 = vmatpush.bf16.msra.mxu0 0
        %1716 = vmatpush.bf16.msra.mxu0 0
        %1717 = vmatpush.bf16.msra.mxu0 0
        %1718 = vmatpush.bf16.msra.mxu0 %v1709
        %1719 = vmatmul.bf16.gmra.mxu0 %v1706
        %v1720 = vpop.f32.mrf.mxu0
        %v1721 = vadd.f32 0.0, %v1720
        %v1722 = vpop.f32.mrf.mxu0
        %v1723 = vadd.f32 0.0, %v1722
        %1724 = vdwg.mxu0
        %v1725 = vadd.f32 %v1564, %v1721
        %v1726 = vadd.f32 %v1565, %v1723
        %v1727 = vld [vmem:[%s858] sm:$0x1]
        %v1729 = vperm.slane %v1727, 0
        %v1731 = vadd.f32 %v1725, %v1729
        %v1732 = vadd.f32 %v1726, %v1729
        %v1733 = vadd.f32 %v889, %v1731
        %v1734 = vadd.f32 %v890, %v1732
        %v1735 = vld [vmem:[%s721] sm:$0x1]
        %v1736 = vld [vmem:[%s861] sm:$0x1]
        %v1737 = vsel %vm893, %v1733, 0.0
        %1738 = vadd.xlane.f32.xlu0 %v1737
        %v1739 = vpop.xlane.xlu0 %1738
        %v1740 = vsel %vm893, %v1734, 0.0
        %1741 = vadd.xlane.f32.xlu0 %v1740
        %v1742 = vpop.xlane.xlu0 %1741
        %v1743 = vmul.f32 %v1739, %v906
        %v1744 = vmul.f32 %v1742, %v906
        %v1745 = vsub.f32 %v1733, %v1743
        %v1746 = vsub.f32 %v1734, %v1744
        %v1747 = vmul.f32 %v1745, %v1745
        %v1748 = vmul.f32 %v1746, %v1746
        %v1749 = vsel %vm893, %v1747, 0.0
        %1750 = vadd.xlane.f32.xlu0 %v1749
        %v1751 = vpop.xlane.xlu0 %1750
        %v1752 = vsel %vm893, %v1748, 0.0
        %1753 = vadd.xlane.f32.xlu0 %v1752
        %v1754 = vpop.xlane.xlu0 %1753
        %v1755 = vmul.f32 %v1751, %v906
        %v1756 = vmul.f32 %v1754, %v906
        %v1757 = vadd.f32 %v1755, 1e-05
        %v1758 = vadd.f32 %v1756, 1e-05
        %v1759 = vrsqrt.pop %v1757
        %v1760 = vmul.f32 %v1759, %v1757
        %v1761 = vmul.f32 %v1760, %v1759
        %v1762 = vmul.f32 0.5, %v1761
        %v1763 = vsub.f32 1.5, %v1762
        %v1764 = vmul.f32 %v1759, %v1763
        %vm1765 = vweird.f32 %v1757
        %vm1766 = vweird.f32 %v1759
        %vm1767 = vmor %vm1765, %vm1766
        %v1768 = vsel %vm1767, %v1759, %v1764
        %v1769 = vrsqrt.pop %v1758
        %v1770 = vmul.f32 %v1769, %v1758
        %v1771 = vmul.f32 %v1770, %v1769
        %v1772 = vmul.f32 0.5, %v1771
        %v1773 = vsub.f32 1.5, %v1772
        %v1774 = vmul.f32 %v1769, %v1773
        %vm1775 = vweird.f32 %v1758
        %vm1776 = vweird.f32 %v1769
        %vm1777 = vmor %vm1775, %vm1776
        %v1778 = vsel %vm1777, %v1769, %v1774
        %v1779 = vmul.f32 %v1745, %v1768
        %v1780 = vmul.f32 %v1746, %v1778
        %v1782 = vperm.slane %v1735, 0
        %v1784 = vmul.f32 %v1779, %v1782
        %v1785 = vmul.f32 %v1780, %v1782
        %v1787 = vperm.slane %v1736, 0
        %v1789 = vadd.f32 %v1784, %v1787
        %v1790 = vadd.f32 %v1785, %v1787
        %v1791 = vpack.c.bf16 %v1790, %v1789
        %v1792 = vld [vmem:[%s866] sm:$0xf]
        %v1793 = vld [vmem:[%s866 + $0x4] sm:$0xf]
        %v1794 = vld [vmem:[%s866 + $0x8] sm:$0xf]
        %v1795 = vld [vmem:[%s866 + $0xc] sm:$0xf]
        %v1796 = vld [vmem:[%s869] sm:$0x1]
        %v1798 = vperm.slane %v1796, 0
        %v1804 = vunpack.c.l.b16 %v1792
        %v1805 = vunpack.c.l.b16 %v1793
        %v1806 = vunpack.c.l.b16 %v1794
        %v1807 = vunpack.c.l.b16 %v1795
        %v1808 = vpack.c.b16 %v1805, %v1804
        %v1809 = vpack.c.b16 %v1807, %v1806
        %v1813 = vsel %vm893, %v1791, 0
        %1815 = vmatpush.bf16.msra.mxu0 0
        %1816 = vmatpush.bf16.msra.mxu0 0
        %1817 = vmatpush.bf16.msra.mxu0 0
        %1818 = vmatpush.bf16.msra.mxu0 0
        %1819 = vmatpush.bf16.msra.mxu0 0
        %1820 = vmatpush.bf16.msra.mxu0 0
        %1821 = vmatpush.bf16.msra.mxu0 %v1809
        %1822 = vmatpush.bf16.msra.mxu0 %v1808
        %1823 = vmatmul.bf16.gmra.mxu0 %v1813
        %v1824 = vpop.f32.mrf.mxu0
        %v1825 = vadd.f32 %v1798, %v1824
        %v1826 = vpop.f32.mrf.mxu0
        %v1827 = vadd.f32 %v1798, %v1826
        %1828 = vdwg.mxu0
        %v1829 = vmul.f32 %v1825, 1.702
        %v1830 = vmul.f32 %v1827, 1.702
        %v1831 = vxor.u32 %v1829, 2147483648
        %v1832 = vxor.u32 %v1830, 2147483648
        %v1833 = vmul.f32 %v1831, 1.442695
        %v1834 = vpow.pop %v1833
        %v1835 = vmul.f32 %v1832, 1.442695
        %v1836 = vpow.pop %v1835
        %v1837 = vadd.f32 %v1834, 1.0
        %v1838 = vadd.f32 %v1836, 1.0
        %v1839 = vrcp.pop %v1837
        %v1840 = vmul.f32 %v1837, %v1839
        %v1841 = vsub.f32 1.0, %v1840
        %v1842 = vmul.f32 %v1839, %v1841
        %v1843 = vadd.f32 %v1839, %v1842
        %vm1844 = vweird.f32 %v1837
        %vm1845 = vweird.f32 %v1839
        %vm1846 = vmor %vm1844, %vm1845
        %v1847 = vsel %vm1846, %v1839, %v1843
        %v1848 = vand.u32 2147483647, %v1837
        %vm1849 = vcmp.eq.f32.partialorder %v1848, 8.507059e+37
        %v1850 = vand.u32 %v1837, 2147483648
        %v1851 = vor.u32 1.1754944e-38, %v1850
        %v1852 = vsel %vm1849, %v1851, %v1847
        %v1853 = vmul.f32 1.0, %v1852
        %v1854 = vrcp.pop %v1838
        %v1855 = vmul.f32 %v1838, %v1854
        %v1856 = vsub.f32 1.0, %v1855
        %v1857 = vmul.f32 %v1854, %v1856
        %v1858 = vadd.f32 %v1854, %v1857
        %vm1859 = vweird.f32 %v1838
        %vm1860 = vweird.f32 %v1854
        %vm1861 = vmor %vm1859, %vm1860
        %v1862 = vsel %vm1861, %v1854, %v1858
        %v1863 = vand.u32 2147483647, %v1838
        %vm1864 = vcmp.eq.f32.partialorder %v1863, 8.507059e+37
        %v1865 = vand.u32 %v1838, 2147483648
        %v1866 = vor.u32 1.1754944e-38, %v1865
        %v1867 = vsel %vm1864, %v1866, %v1862
        %v1868 = vmul.f32 1.0, %v1867
        %v1869 = vmul.f32 %v1825, %v1853
        %v1870 = vmul.f32 %v1827, %v1868
        %v1871 = vpack.c.bf16 %v1870, %v1869
        %v1872 = vld [vmem:[%s874] sm:$0xf]
        %v1873 = vld [vmem:[%s874 + $0x4] sm:$0xf]
        %v1874 = vld [vmem:[%s874 + $0x8] sm:$0xf]
        %v1875 = vld [vmem:[%s874 + $0xc] sm:$0xf]
        %v1876 = vld [vmem:[%s874 + $0x10] sm:$0xf]
        %v1877 = vld [vmem:[%s874 + $0x14] sm:$0xf]
        %v1878 = vld [vmem:[%s874 + $0x18] sm:$0xf]
        %v1879 = vld [vmem:[%s874 + $0x1c] sm:$0xf]
        %v1880 = vld [vmem:[%s874 + $0x20] sm:$0xf]
        %v1881 = vld [vmem:[%s874 + $0x24] sm:$0xf]
        %v1882 = vld [vmem:[%s874 + $0x28] sm:$0xf]
        %v1883 = vld [vmem:[%s874 + $0x2c] sm:$0xf]
        %v1884 = vld [vmem:[%s874 + $0x30] sm:$0xf]
        %v1885 = vld [vmem:[%s874 + $0x34] sm:$0xf]
        %v1886 = vld [vmem:[%s874 + $0x38] sm:$0xf]
        %v1887 = vld [vmem:[%s874 + $0x3c] sm:$0xf]
        %v1888 = vld [vmem:[%s877] sm:$0x1]
        %v1890 = vperm.slane %v1888, 0
        %v1908 = vunpack.c.l.b16 %v1872
        %v1909 = vunpack.c.l.b16 %v1873
        %v1910 = vunpack.c.l.b16 %v1874
        %v1911 = vunpack.c.l.b16 %v1875
        %v1912 = vunpack.c.l.b16 %v1876
        %v1913 = vunpack.c.l.b16 %v1877
        %v1914 = vunpack.c.l.b16 %v1878
        %v1915 = vunpack.c.l.b16 %v1879
        %v1916 = vunpack.c.l.b16 %v1880
        %v1917 = vunpack.c.l.b16 %v1881
        %v1918 = vunpack.c.l.b16 %v1882
        %v1919 = vunpack.c.l.b16 %v1883
        %v1920 = vunpack.c.l.b16 %v1884
        %v1921 = vunpack.c.l.b16 %v1885
        %v1922 = vunpack.c.l.b16 %v1886
        %v1923 = vunpack.c.l.b16 %v1887
        %v1924 = vpack.c.b16 %v1909, %v1908
        %v1925 = vpack.c.b16 %v1911, %v1910
        %v1926 = vpack.c.b16 %v1913, %v1912
        %v1927 = vpack.c.b16 %v1915, %v1914
        %v1928 = vpack.c.b16 %v1917, %v1916
        %v1929 = vpack.c.b16 %v1919, %v1918
        %v1930 = vpack.c.b16 %v1921, %v1920
        %v1931 = vpack.c.b16 %v1923, %v1922
        %1940 = vmatpush.bf16.msra.mxu0 %v1931
        %1941 = vmatpush.bf16.msra.mxu0 %v1930
        %1942 = vmatpush.bf16.msra.mxu0 %v1929
        %1943 = vmatpush.bf16.msra.mxu0 %v1928
        %1944 = vmatpush.bf16.msra.mxu0 %v1927
        %1945 = vmatpush.bf16.msra.mxu0 %v1926
        %1946 = vmatpush.bf16.msra.mxu0 %v1925
        %1947 = vmatpush.bf16.msra.mxu0 %v1924
        %1948 = vmatmul.bf16.gmra.mxu0 %v1871
        %v1949 = vpop.f32.mrf.mxu0
        %v1950 = vadd.f32 %v1890, %v1949
        %v1951 = vpop.f32.mrf.mxu0
        %v1952 = vadd.f32 %v1890, %v1951
        %1953 = vdwg.mxu0
        %v1954 = vadd.f32 %v1733, %v1950
        %v1955 = vadd.f32 %v1734, %v1952
        %1956 = vst.msk [vmem:[#allocation2] sm:$0xff] %vm893, %v1954
        %1957 = vst.msk [vmem:[#allocation2 + $0x8] sm:$0xff] %vm893, %v1955
        %p1958 = scmp.eq.s32.totalorder %s41, 1
        // Predicated region
        $region109: #{tpu_custom_call.1} parent=87 // pred_check
          %p1959 = pneg %p1958
        $region110: #{tpu_custom_call.1} parent=87 // pred_check_branch
          %1961 = sbr.rel (%p1959) target = $region112
        $region111: #{tpu_custom_call.1} parent=87 // pred_region
          %1962 = vst.msk [vmem:[#allocation11] sm:$0xff] %vm893, %v1954
          %1963 = vst.msk [vmem:[#allocation11 + $0x8] sm:$0xff] %vm893, %v1955
        $region112: #{tpu_custom_call.1} parent=87 // pred_fallthru
          _
        // Predicated region
        $region113: #{tpu_custom_call.1} parent=87 // pred_check
          %p1964 = pneg %p508
        $region114: #{tpu_custom_call.1} parent=87 // pred_check_branch
          %1966 = sbr.rel (%p1964) target = $region116
        $region115: #{tpu_custom_call.1} parent=87 // pred_region
          %s1967 = smul.u32 2, %s40
          %1969 = vsyncadd [#allocation5], 0
          %s1970 = smul.addr %s1967, 8
          %s1971 = scalar_lea.hbm %s17, %s1970
          %s1972 = sshll.u32 [#allocation11], 4
          %s1973 = int_to_ptr.vmem [resolvable:$true] %s1972
          %s1974 = sshll.u32 %s1971, 4
          %s1975 = int_to_ptr.hbm [resolvable:$true] %s1974
          %1980 = dma.vmem_to_hbm [thread:$0]  %s1973, 256, %s1975, [#allocation5], 128, 128, 8
        $region116: #{tpu_custom_call.1} parent=87 // pred_fallthru
          _
        // Predicated region
        $region117: #{tpu_custom_call.1} parent=87 // pred_check
          %p1981 = pneg %p508
        $region118: #{tpu_custom_call.1} parent=87 // pred_check_branch
          %1983 = sbr.rel (%p1981) target = $region120
        $region119: #{tpu_custom_call.1} parent=87 // pred_region
          %1985 = dma.done [#allocation5], 256
        $region120: #{tpu_custom_call.1} parent=87 // pred_fallthru
          _
      $region88: #{tpu_custom_call.1} parent=5 // pred_fallthru
        _
      %p1986 = scmp.le.s32.totalorder 2, %s31
      // Predicated region
      $region121: #{tpu_custom_call.1} parent=5 // pred_check
        %p1987 = pneg %p1986
      $region122: #{tpu_custom_call.1} parent=5 // pred_check_branch
        %1989 = sbr.rel (%p1987) target = $region124
      $region123: #{tpu_custom_call.1} parent=5 // pred_region
        %s1990 = ssub.s32 %s31, 2
      $region124: #{tpu_custom_call.1} parent=5 // pred_fallthru
        _
    $region6: #{tpu_custom_call.1} parent=1 // loop_footer
      %s35 = sadd.s32 1, %s31
    $region7: #{tpu_custom_call.1} parent=1 // loop_footer_branch
      %30 = sbr.rel target = $region3
    $region8: #{tpu_custom_call.1} parent=1 // loop_exit
      _
    %1991 = vsyncpa [#allocation4], 1
    %s1992 = scalar_lea.sflag [#allocation4], 1
    %1993 = vsyncpa %s1992, 1
    %1994 = vsyncpa [#allocation7], 1
    %s1995 = scalar_lea.sflag [#allocation7], 1
    %1996 = vsyncpa %s1995, 1
    %1997 = vsyncpa [#allocation10], 1
    %s1998 = scalar_lea.sflag [#allocation10], 1
    %1999 = vsyncpa %s1998, 1
    %2000 = vsyncpa [#allocation5], 1
    %s2001 = scalar_lea.sflag [#allocation5], 1
    %2002 = vsyncpa %s2001, 1

</llo_original>
